<compile_context>
chip_gen: v6e
topology: v6e:2x2x1
jax: 0.10.0
libtpu: 0.0.40
codegen_flags: <defaults>
</compile_context>

<pallas_src>
import functools

import jax
import jax.numpy as jnp
from jax import lax
from jax.experimental import pallas as pl
from jax.experimental.pallas import tpu as pltpu


def _make_kernel(n_sig, C, T, f_blk, strip, alpha):
    """Build the fused PhaseEncoder kernel for static (n_sig, C, T, f_blk, strip, alpha)."""
    n_taps = 3
    n_strips = f_blk // strip

    def kernel(*refs):
        x_refs = refs[:n_sig]                                    # each (1, 2, f_blk, T) VMEM
        wr_ref, wi_ref, br_ref, bi_ref = refs[n_sig:n_sig + 4]   # 1-D SMEM (folded params)
        o_ref = refs[n_sig + 4]                                  # (1, C, f_blk, T) VMEM

        # Hoist the (tiny) folded channel-mix scalars out of the strip loop.
        WR = [[[wr_ref[(cp * n_sig + s) * n_taps + k] for k in range(n_taps)]
               for s in range(n_sig)] for cp in range(C)]
        WI = [[[wi_ref[(cp * n_sig + s) * n_taps + k] for k in range(n_taps)]
               for s in range(n_sig)] for cp in range(C)]
        BR = [br_ref[cp] for cp in range(C)]
        BI = [bi_ref[cp] for cp in range(C)]

        # Causal-shift masks (zero the first `sh` lanes), shared by all signals,
        # channels and strips.
        lane = lax.broadcasted_iota(jnp.int32, (strip, T), 1)
        shift_mask = {1: lane >= 1, 2: lane >= 2}

        def process_strip(i, carry):
            r0 = i * strip
            if not isinstance(r0, int):
                r0 = pl.multiple_of(r0, strip)

            # Causal 3-tap complex inputs for every signal: roll on the (idle)
            # XLU slot + mask — no wrapper pad, blocks stay lane-aligned.
            taps = []                                            # [s][k] -> (tr, ti)
            for s in range(n_sig):
                xr = x_refs[s][0, 0, pl.ds(r0, strip), :].astype(jnp.float32)
                xi = x_refs[s][0, 1, pl.ds(r0, strip), :].astype(jnp.float32)
                per_sig = []
                for k in range(n_taps):
                    sh = (n_taps - 1) - k                        # tap k reads x[t - sh]
                    if sh == 0:
                        per_sig.append((xr, xi))
                    else:
                        m = shift_mask[sh]
                        tr = jnp.where(m, pltpu.roll(xr, sh, 1), 0.0)
                        ti = jnp.where(m, pltpu.roll(xi, sh, 1), 0.0)
                        per_sig.append((tr, ti))
                taps.append(per_sig)

            # Folded stage-1 conv + CLP mix: each output channel directly from
            # the n_sig*3 taps, then magnitude + **alpha.
            for cp in range(C):
                R = None
                I = None
                for s in range(n_sig):
                    for k in range(n_taps):
                        tr, ti = taps[s][k]
                        wr = WR[cp][s][k]
                        wi = WI[cp][s][k]
                        r_t = wr * tr - wi * ti
                        i_t = wi * tr + wr * ti
                        R = r_t if R is None else R + r_t
                        I = i_t if I is None else I + i_t
                R = R + BR[cp]
                I = I + BI[cp]
                amp2 = R * R + I * I + 1e-8                      # = amp ** 2
                if alpha == 0.5:
                    out_c = jnp.sqrt(jnp.sqrt(amp2))
                elif alpha == 1.0:
                    out_c = jnp.sqrt(amp2)
                else:
                    out_c = amp2 ** (alpha * 0.5)                # one pow, no extra sqrt
                o_ref[0, cp, pl.ds(r0, strip), :] = out_c.astype(o_ref.dtype)
            return carry

        if n_strips == 1:
            process_strip(0, 0)
        else:
            lax.fori_loop(0, n_strips, process_strip, 0, unroll=True)

    return kernel


@functools.partial(jax.jit, static_argnames=("alpha", "f_tile"))
def phase_encoder_forward(cspecs, w1r, w1i, b1r, b1i, w2r, w2i, b2r, b2i,
                          *, alpha=0.5, f_tile=128):
    """Fused PhaseEncoder forward.

    cspecs   : tuple of n_sig arrays [B, 2, F, T]  (channel 0 = real, 1 = imag)
    w1r, w1i : [n_sig, cout//2, 1, 1, 3]   stage-1 ComplexConv2d (1,3) weights
    b1r, b1i : [n_sig, cout//2]            stage-1 biases
    w2r, w2i : [C, C, 1, 1]                CLP ComplexConv2d (1,1) weights (C = n_sig*cout//2)
    b2r, b2i : [C]                         CLP biases
    returns  : [B, C, F, T] = amp ** alpha
    """
    n_sig = len(cspecs)
    B, two, F, T = cspecs[0].shape
    assert two == 2, "each cspec must carry exactly one complex channel (cin=2)"
    co1 = w1r.shape[1]
    C = n_sig * co1
    dtype = cspecs[0].dtype

    # ---- Fold the stage-1 (1,3) complex conv and the CLP 1x1 complex mix into
    #      one composite complex weight Weff[cp, s, k] and bias beff[cp].
    #      (Effective stage biases are (br - bi) + j(br + bi), per the PyTorch math.)
    R1 = n_sig * co1
    W1R = w1r.reshape(R1, 3).astype(jnp.float32)
    W1I = w1i.reshape(R1, 3).astype(jnp.float32)
    B1R = (b1r - b1i).reshape(R1).astype(jnp.float32)
    B1I = (b1r + b1i).reshape(R1).astype(jnp.float32)
    W2R = w2r.reshape(C, C).astype(jnp.float32)
    W2I = w2i.reshape(C, C).astype(jnp.float32)
    B2R = (b2r - b2i).astype(jnp.float32)
    B2I = (b2r + b2i).astype(jnp.float32)

    WeR = jnp.einsum("pr,rk->prk", W2R, W1R) - jnp.einsum("pr,rk->prk", W2I, W1I)
    WeI = jnp.einsum("pr,rk->prk", W2I, W1R) + jnp.einsum("pr,rk->prk", W2R, W1I)
    WeR = WeR.reshape(C, n_sig, co1, 3).sum(axis=2).reshape(-1)     # [C*n_sig*3]
    WeI = WeI.reshape(C, n_sig, co1, 3).sum(axis=2).reshape(-1)
    # elementwise-mul + sum (not a matvec) to stay in exact f32
    BeR = (W2R * B1R[None, :]).sum(axis=1) - (W2I * B1I[None, :]).sum(axis=1) + B2R
    BeI = (W2I * B1R[None, :]).sum(axis=1) + (W2R * B1I[None, :]).sum(axis=1) + B2I

    # ---- F-block size: VMEM budget (v7x has 64 MiB phys / 32 MiB default scoped)
    #      + grid-size guard so both TensorCores and the DMA pipeline stay fed.
    rows_bytes = (2 * n_sig * 2 + 2 * C) * T * 4        # dbl-buffered inputs + output / f-row
    vmem_budget = 20 << 20
    f_blk = min(f_tile, F, max(8, vmem_budget // max(rows_bytes, 1)))
    while f_blk > 8 and B * (-(-F // f_blk)) < 8:
        f_blk = max(8, f_blk // 2)
    if f_blk < F:
        f_blk = max(8, (f_blk // 8) * 8)                 # sublane-aligned partial blocks
    else:
        f_blk = F
    strip = 8 if (f_blk % 8 == 0) else f_blk

    vmem_need = (2 * n_sig * 2 + 2 * C) * f_blk * T * 4
    vmem_limit = int(min(max(vmem_need * 2, 16 << 20), 48 << 20))

    grid = (B, pl.cdiv(F, f_blk))
    smem_spec = pl.BlockSpec(memory_space=pltpu.MemorySpace.SMEM)
    in_specs = [pl.BlockSpec((1, 2, f_blk, T), lambda b, fi: (b, 0, fi, 0))
                for _ in range(n_sig)]
    in_specs += [smem_spec] * 4
    out_specs = pl.BlockSpec((1, C, f_blk, T), lambda b, fi: (b, 0, fi, 0))

    kernel = _make_kernel(n_sig, C, T, f_blk, strip, float(alpha))

    return pl.pallas_call(
        kernel,
        out_shape=jax.ShapeDtypeStruct((B, C, F, T), dtype),
        grid=grid,
        in_specs=in_specs,
        out_specs=out_specs,
        compiler_params=pltpu.CompilerParams(
            dimension_semantics=("parallel", "parallel"),
            vmem_limit_bytes=vmem_limit),
    )(*cspecs, WeR, WeI, BeR, BeI)


def _reference(cspecs, w1r, w1i, b1r, b1i, w2r, w2i, b2r, b2i, alpha=0.5):
    """Pure-JAX reference mirroring the PyTorch PhaseEncoder forward exactly."""
    n_sig = len(cspecs)
    B, _, F, T = cspecs[0].shape
    co1 = w1r.shape[1]
    hi = jax.lax.Precision.HIGHEST

    def conv1x3(xp, w, b):
        # xp: [B, F, T+2] (causally padded), w: [co1, 1, 1, 3], b: [co1]
        wk = w.reshape(co1, 3)
        taps = jnp.stack([xp[..., k:k + T] for k in range(3)], axis=0)  # [3,B,F,T]
        return jnp.einsum("ok,kbft->boft", wk, taps, precision=hi) + b[None, :, None, None]

    reals, imags = [], []
    for s in range(n_sig):
        xr = jnp.pad(cspecs[s][:, 0], ((0, 0), (0, 0), (2, 0)))
        xi = jnp.pad(cspecs[s][:, 1], ((0, 0), (0, 0), (2, 0)))
        r2r = conv1x3(xr, w1r[s], b1r[s])
        i2i = conv1x3(xi, w1i[s], b1i[s])
        r2i = conv1x3(xr, w1i[s], b1i[s])
        i2r = conv1x3(xi, w1r[s], b1r[s])
        reals.append(r2r - i2i)
        imags.append(r2i + i2r)

    real = jnp.concatenate(reals, axis=1)   # complex_cat: reals then imags, by signal
    imag = jnp.concatenate(imags, axis=1)
    C = real.shape[1]
    W2R = w2r.reshape(C, C)
    W2I = w2i.reshape(C, C)

    def mix(x, w, b):
        return jnp.einsum("bcft,oc->boft", x, w, precision=hi) + b[None, :, None, None]

    R = mix(real, W2R, b2r) - mix(imag, W2I, b2i)
    I = mix(real, W2I, b2i) + mix(imag, W2R, b2r)
    amp = jnp.sqrt(R ** 2 + I ** 2 + 1e-8)
    return amp ** alpha


if __name__ == "__main__":
    # PhaseEncoder(cout=4, n_sig=2, cin=2, alpha=0.5)
    cout, n_sig, alpha = 4, 2, 0.5
    co1 = cout // 2
    C = co1 * n_sig                      # 4 output channels
    B, F, T = 2, 16, 128                 # T lane-aligned (multiple of 128), as in production

    key = jax.random.PRNGKey(0)
    ks = jax.random.split(key, n_sig + 8)
    cspecs = tuple(jax.random.normal(ks[s], (B, 2, F, T), dtype=jnp.float32)
                   for s in range(n_sig))

    # Conv weights mirror the PyTorch init (Normal, std=0.05); small non-zero
    # biases are used so the bias datapath is exercised by the check.
    w1r = 0.05 * jax.random.normal(ks[n_sig + 0], (n_sig, co1, 1, 1, 3), jnp.float32)
    w1i = 0.05 * jax.random.normal(ks[n_sig + 1], (n_sig, co1, 1, 1, 3), jnp.float32)
    b1r = 0.02 * jax.random.normal(ks[n_sig + 2], (n_sig, co1), jnp.float32)
    b1i = 0.02 * jax.random.normal(ks[n_sig + 3], (n_sig, co1), jnp.float32)
    w2r = 0.05 * jax.random.normal(ks[n_sig + 4], (C, C, 1, 1), jnp.float32)
    w2i = 0.05 * jax.random.normal(ks[n_sig + 5], (C, C, 1, 1), jnp.float32)
    b2r = 0.02 * jax.random.normal(ks[n_sig + 6], (C,), jnp.float32)
    b2i = 0.02 * jax.random.normal(ks[n_sig + 7], (C,), jnp.float32)

    out = phase_encoder_forward(cspecs, w1r, w1i, b1r, b1i, w2r, w2i, b2r, b2i,
                                alpha=alpha)
    out = jax.block_until_ready(out)

    ref = _reference(cspecs, w1r, w1i, b1r, b1i, w2r, w2i, b2r, b2i, alpha=alpha)
    assert out.shape == (B, C, F, T), out.shape
    # Folding W2@W1 changes the f32 accumulation order vs the two-stage
    # reference; tolerance is loosened accordingly (errors are a few ulps of
    # the intermediates, amplified by the ^0.25 near the eps floor).
    assert jnp.allclose(out, ref, rtol=2e-3, atol=1e-4), (
        "mismatch vs reference, max abs err = %e"
        % float(jnp.max(jnp.abs(out - ref))))

    print("KERNEL_OK")
</pallas_src>

<mosaic_0001>
module attributes {stable_mosaic.version = 11 : i64} {
  func.func @kernel(%arg0: i32, %arg1: i32, %arg2: memref<1x2x8x128xf32, #tpu.memory_space<vmem>>, %arg3: memref<1x2x8x128xf32, #tpu.memory_space<vmem>>, %arg4: memref<24xf32, #tpu.memory_space<smem>>, %arg5: memref<24xf32, #tpu.memory_space<smem>>, %arg6: memref<4xf32, #tpu.memory_space<smem>>, %arg7: memref<4xf32, #tpu.memory_space<smem>>, %arg8: memref<1x4x8x128xf32, #tpu.memory_space<vmem>>) attributes {dimension_semantics = [#tpu.dimension_semantics<parallel>, #tpu.dimension_semantics<parallel>], iteration_bounds = array<i64: 2, 2>, scalar_prefetch = 0 : i64, scratch_operands = 0 : i64, tpu.core_type = #tpu.core_type<tc>, window_params = [{transform_indices = @transform_0, window_bounds = array<i64: 1, 2, 8, 128>}, {transform_indices = @transform_1, window_bounds = array<i64: 1, 2, 8, 128>}, {transform_indices = @transform_2, window_bounds = array<i64: 24>}, {transform_indices = @transform_3, window_bounds = array<i64: 24>}, {transform_indices = @transform_4, window_bounds = array<i64: 4>}, {transform_indices = @transform_5, window_bounds = array<i64: 4>}, {transform_indices = @transform_6, window_bounds = array<i64: 1, 4, 8, 128>}]} {
    %c0 = arith.constant 0 : index
    %0 = memref.load %arg4[%c0] : memref<24xf32, #tpu.memory_space<smem>>
    %c1 = arith.constant 1 : index
    %1 = memref.load %arg4[%c1] : memref<24xf32, #tpu.memory_space<smem>>
    %c2 = arith.constant 2 : index
    %2 = memref.load %arg4[%c2] : memref<24xf32, #tpu.memory_space<smem>>
    %c3 = arith.constant 3 : index
    %3 = memref.load %arg4[%c3] : memref<24xf32, #tpu.memory_space<smem>>
    %c4 = arith.constant 4 : index
    %4 = memref.load %arg4[%c4] : memref<24xf32, #tpu.memory_space<smem>>
    %c5 = arith.constant 5 : index
    %5 = memref.load %arg4[%c5] : memref<24xf32, #tpu.memory_space<smem>>
    %c6 = arith.constant 6 : index
    %6 = memref.load %arg4[%c6] : memref<24xf32, #tpu.memory_space<smem>>
    %c7 = arith.constant 7 : index
    %7 = memref.load %arg4[%c7] : memref<24xf32, #tpu.memory_space<smem>>
    %c8 = arith.constant 8 : index
    %8 = memref.load %arg4[%c8] : memref<24xf32, #tpu.memory_space<smem>>
    %c9 = arith.constant 9 : index
    %9 = memref.load %arg4[%c9] : memref<24xf32, #tpu.memory_space<smem>>
    %c10 = arith.constant 10 : index
    %10 = memref.load %arg4[%c10] : memref<24xf32, #tpu.memory_space<smem>>
    %c11 = arith.constant 11 : index
    %11 = memref.load %arg4[%c11] : memref<24xf32, #tpu.memory_space<smem>>
    %c12 = arith.constant 12 : index
    %12 = memref.load %arg4[%c12] : memref<24xf32, #tpu.memory_space<smem>>
    %c13 = arith.constant 13 : index
    %13 = memref.load %arg4[%c13] : memref<24xf32, #tpu.memory_space<smem>>
    %c14 = arith.constant 14 : index
    %14 = memref.load %arg4[%c14] : memref<24xf32, #tpu.memory_space<smem>>
    %c15 = arith.constant 15 : index
    %15 = memref.load %arg4[%c15] : memref<24xf32, #tpu.memory_space<smem>>
    %c16 = arith.constant 16 : index
    %16 = memref.load %arg4[%c16] : memref<24xf32, #tpu.memory_space<smem>>
    %c17 = arith.constant 17 : index
    %17 = memref.load %arg4[%c17] : memref<24xf32, #tpu.memory_space<smem>>
    %c18 = arith.constant 18 : index
    %18 = memref.load %arg4[%c18] : memref<24xf32, #tpu.memory_space<smem>>
    %c19 = arith.constant 19 : index
    %19 = memref.load %arg4[%c19] : memref<24xf32, #tpu.memory_space<smem>>
    %c20 = arith.constant 20 : index
    %20 = memref.load %arg4[%c20] : memref<24xf32, #tpu.memory_space<smem>>
    %c21 = arith.constant 21 : index
    %21 = memref.load %arg4[%c21] : memref<24xf32, #tpu.memory_space<smem>>
    %c22 = arith.constant 22 : index
    %22 = memref.load %arg4[%c22] : memref<24xf32, #tpu.memory_space<smem>>
    %c23 = arith.constant 23 : index
    %23 = memref.load %arg4[%c23] : memref<24xf32, #tpu.memory_space<smem>>
    %c0_0 = arith.constant 0 : index
    %24 = memref.load %arg5[%c0_0] : memref<24xf32, #tpu.memory_space<smem>>
    %c1_1 = arith.constant 1 : index
    %25 = memref.load %arg5[%c1_1] : memref<24xf32, #tpu.memory_space<smem>>
    %c2_2 = arith.constant 2 : index
    %26 = memref.load %arg5[%c2_2] : memref<24xf32, #tpu.memory_space<smem>>
    %c3_3 = arith.constant 3 : index
    %27 = memref.load %arg5[%c3_3] : memref<24xf32, #tpu.memory_space<smem>>
    %c4_4 = arith.constant 4 : index
    %28 = memref.load %arg5[%c4_4] : memref<24xf32, #tpu.memory_space<smem>>
    %c5_5 = arith.constant 5 : index
    %29 = memref.load %arg5[%c5_5] : memref<24xf32, #tpu.memory_space<smem>>
    %c6_6 = arith.constant 6 : index
    %30 = memref.load %arg5[%c6_6] : memref<24xf32, #tpu.memory_space<smem>>
    %c7_7 = arith.constant 7 : index
    %31 = memref.load %arg5[%c7_7] : memref<24xf32, #tpu.memory_space<smem>>
    %c8_8 = arith.constant 8 : index
    %32 = memref.load %arg5[%c8_8] : memref<24xf32, #tpu.memory_space<smem>>
    %c9_9 = arith.constant 9 : index
    %33 = memref.load %arg5[%c9_9] : memref<24xf32, #tpu.memory_space<smem>>
    %c10_10 = arith.constant 10 : index
    %34 = memref.load %arg5[%c10_10] : memref<24xf32, #tpu.memory_space<smem>>
    %c11_11 = arith.constant 11 : index
    %35 = memref.load %arg5[%c11_11] : memref<24xf32, #tpu.memory_space<smem>>
    %c12_12 = arith.constant 12 : index
    %36 = memref.load %arg5[%c12_12] : memref<24xf32, #tpu.memory_space<smem>>
    %c13_13 = arith.constant 13 : index
    %37 = memref.load %arg5[%c13_13] : memref<24xf32, #tpu.memory_space<smem>>
    %c14_14 = arith.constant 14 : index
    %38 = memref.load %arg5[%c14_14] : memref<24xf32, #tpu.memory_space<smem>>
    %c15_15 = arith.constant 15 : index
    %39 = memref.load %arg5[%c15_15] : memref<24xf32, #tpu.memory_space<smem>>
    %c16_16 = arith.constant 16 : index
    %40 = memref.load %arg5[%c16_16] : memref<24xf32, #tpu.memory_space<smem>>
    %c17_17 = arith.constant 17 : index
    %41 = memref.load %arg5[%c17_17] : memref<24xf32, #tpu.memory_space<smem>>
    %c18_18 = arith.constant 18 : index
    %42 = memref.load %arg5[%c18_18] : memref<24xf32, #tpu.memory_space<smem>>
    %c19_19 = arith.constant 19 : index
    %43 = memref.load %arg5[%c19_19] : memref<24xf32, #tpu.memory_space<smem>>
    %c20_20 = arith.constant 20 : index
    %44 = memref.load %arg5[%c20_20] : memref<24xf32, #tpu.memory_space<smem>>
    %c21_21 = arith.constant 21 : index
    %45 = memref.load %arg5[%c21_21] : memref<24xf32, #tpu.memory_space<smem>>
    %c22_22 = arith.constant 22 : index
    %46 = memref.load %arg5[%c22_22] : memref<24xf32, #tpu.memory_space<smem>>
    %c23_23 = arith.constant 23 : index
    %47 = memref.load %arg5[%c23_23] : memref<24xf32, #tpu.memory_space<smem>>
    %c0_24 = arith.constant 0 : index
    %48 = memref.load %arg6[%c0_24] : memref<4xf32, #tpu.memory_space<smem>>
    %c1_25 = arith.constant 1 : index
    %49 = memref.load %arg6[%c1_25] : memref<4xf32, #tpu.memory_space<smem>>
    %c2_26 = arith.constant 2 : index
    %50 = memref.load %arg6[%c2_26] : memref<4xf32, #tpu.memory_space<smem>>
    %c3_27 = arith.constant 3 : index
    %51 = memref.load %arg6[%c3_27] : memref<4xf32, #tpu.memory_space<smem>>
    %c0_28 = arith.constant 0 : index
    %52 = memref.load %arg7[%c0_28] : memref<4xf32, #tpu.memory_space<smem>>
    %c1_29 = arith.constant 1 : index
    %53 = memref.load %arg7[%c1_29] : memref<4xf32, #tpu.memory_space<smem>>
    %c2_30 = arith.constant 2 : index
    %54 = memref.load %arg7[%c2_30] : memref<4xf32, #tpu.memory_space<smem>>
    %c3_31 = arith.constant 3 : index
    %55 = memref.load %arg7[%c3_31] : memref<4xf32, #tpu.memory_space<smem>>
    %56 = tpu.iota {dimensions = array<i32: 1>} : vector<8x128xi32>
    %c1_i32 = arith.constant 1 : i32
    %57 = vector.broadcast %c1_i32 : i32 to vector<8x128xi32>
    %58 = arith.cmpi sge, %56, %57 : vector<8x128xi32>
    %c2_i32 = arith.constant 2 : i32
    %59 = vector.broadcast %c2_i32 : i32 to vector<8x128xi32>
    %60 = arith.cmpi sge, %56, %59 : vector<8x128xi32>
    %c0_32 = arith.constant 0 : index
    %c0_33 = arith.constant 0 : index
    %c0_34 = arith.constant 0 : index
    %c0_35 = arith.constant 0 : index
    %61 = vector.load %arg2[%c0_32, %c0_33, %c0_34, %c0_35] : memref<1x2x8x128xf32, #tpu.memory_space<vmem>>, vector<1x1x8x128xf32>
    %62 = vector.shape_cast %61 : vector<1x1x8x128xf32> to vector<8x128xf32>
    %c0_36 = arith.constant 0 : index
    %c1_37 = arith.constant 1 : index
    %c0_38 = arith.constant 0 : index
    %c0_39 = arith.constant 0 : index
    %63 = vector.load %arg2[%c0_36, %c1_37, %c0_38, %c0_39] : memref<1x2x8x128xf32, #tpu.memory_space<vmem>>, vector<1x1x8x128xf32>
    %64 = vector.shape_cast %63 : vector<1x1x8x128xf32> to vector<8x128xf32>
    %c2_i32_40 = arith.constant 2 : i32
    %65 = tpu.dynamic_rotate %62 by %c2_i32_40 dim 1 : vector<8x128xf32>, i32 -> vector<8x128xf32>
    %cst = arith.constant 0.000000e+00 : f32
    %66 = vector.broadcast %cst : f32 to vector<8x128xf32>
    %67 = arith.select %60, %65, %66 : vector<8x128xi1>, vector<8x128xf32>
    %c2_i32_41 = arith.constant 2 : i32
    %68 = tpu.dynamic_rotate %64 by %c2_i32_41 dim 1 : vector<8x128xf32>, i32 -> vector<8x128xf32>
    %cst_42 = arith.constant 0.000000e+00 : f32
    %69 = vector.broadcast %cst_42 : f32 to vector<8x128xf32>
    %70 = arith.select %60, %68, %69 : vector<8x128xi1>, vector<8x128xf32>
    %c1_i32_43 = arith.constant 1 : i32
    %71 = tpu.dynamic_rotate %62 by %c1_i32_43 dim 1 : vector<8x128xf32>, i32 -> vector<8x128xf32>
    %cst_44 = arith.constant 0.000000e+00 : f32
    %72 = vector.broadcast %cst_44 : f32 to vector<8x128xf32>
    %73 = arith.select %58, %71, %72 : vector<8x128xi1>, vector<8x128xf32>
    %c1_i32_45 = arith.constant 1 : i32
    %74 = tpu.dynamic_rotate %64 by %c1_i32_45 dim 1 : vector<8x128xf32>, i32 -> vector<8x128xf32>
    %cst_46 = arith.constant 0.000000e+00 : f32
    %75 = vector.broadcast %cst_46 : f32 to vector<8x128xf32>
    %76 = arith.select %58, %74, %75 : vector<8x128xi1>, vector<8x128xf32>
    %c0_47 = arith.constant 0 : index
    %c0_48 = arith.constant 0 : index
    %c0_49 = arith.constant 0 : index
    %c0_50 = arith.constant 0 : index
    %77 = vector.load %arg3[%c0_47, %c0_48, %c0_49, %c0_50] : memref<1x2x8x128xf32, #tpu.memory_space<vmem>>, vector<1x1x8x128xf32>
    %78 = vector.shape_cast %77 : vector<1x1x8x128xf32> to vector<8x128xf32>
    %c0_51 = arith.constant 0 : index
    %c1_52 = arith.constant 1 : index
    %c0_53 = arith.constant 0 : index
    %c0_54 = arith.constant 0 : index
    %79 = vector.load %arg3[%c0_51, %c1_52, %c0_53, %c0_54] : memref<1x2x8x128xf32, #tpu.memory_space<vmem>>, vector<1x1x8x128xf32>
    %80 = vector.shape_cast %79 : vector<1x1x8x128xf32> to vector<8x128xf32>
    %c2_i32_55 = arith.constant 2 : i32
    %81 = tpu.dynamic_rotate %78 by %c2_i32_55 dim 1 : vector<8x128xf32>, i32 -> vector<8x128xf32>
    %cst_56 = arith.constant 0.000000e+00 : f32
    %82 = vector.broadcast %cst_56 : f32 to vector<8x128xf32>
    %83 = arith.select %60, %81, %82 : vector<8x128xi1>, vector<8x128xf32>
    %c2_i32_57 = arith.constant 2 : i32
    %84 = tpu.dynamic_rotate %80 by %c2_i32_57 dim 1 : vector<8x128xf32>, i32 -> vector<8x128xf32>
    %cst_58 = arith.constant 0.000000e+00 : f32
    %85 = vector.broadcast %cst_58 : f32 to vector<8x128xf32>
    %86 = arith.select %60, %84, %85 : vector<8x128xi1>, vector<8x128xf32>
    %c1_i32_59 = arith.constant 1 : i32
    %87 = tpu.dynamic_rotate %78 by %c1_i32_59 dim 1 : vector<8x128xf32>, i32 -> vector<8x128xf32>
    %cst_60 = arith.constant 0.000000e+00 : f32
    %88 = vector.broadcast %cst_60 : f32 to vector<8x128xf32>
    %89 = arith.select %58, %87, %88 : vector<8x128xi1>, vector<8x128xf32>
    %c1_i32_61 = arith.constant 1 : i32
    %90 = tpu.dynamic_rotate %80 by %c1_i32_61 dim 1 : vector<8x128xf32>, i32 -> vector<8x128xf32>
    %cst_62 = arith.constant 0.000000e+00 : f32
    %91 = vector.broadcast %cst_62 : f32 to vector<8x128xf32>
    %92 = arith.select %58, %90, %91 : vector<8x128xi1>, vector<8x128xf32>
    %93 = vector.broadcast %0 : f32 to vector<8x128xf32>
    %94 = arith.mulf %93, %67 : vector<8x128xf32>
    %95 = vector.broadcast %24 : f32 to vector<8x128xf32>
    %96 = arith.mulf %95, %70 : vector<8x128xf32>
    %97 = arith.subf %94, %96 : vector<8x128xf32>
    %98 = vector.broadcast %24 : f32 to vector<8x128xf32>
    %99 = arith.mulf %98, %67 : vector<8x128xf32>
    %100 = vector.broadcast %0 : f32 to vector<8x128xf32>
    %101 = arith.mulf %100, %70 : vector<8x128xf32>
    %102 = arith.addf %99, %101 : vector<8x128xf32>
    %103 = vector.broadcast %1 : f32 to vector<8x128xf32>
    %104 = arith.mulf %103, %73 : vector<8x128xf32>
    %105 = vector.broadcast %25 : f32 to vector<8x128xf32>
    %106 = arith.mulf %105, %76 : vector<8x128xf32>
    %107 = arith.subf %104, %106 : vector<8x128xf32>
    %108 = vector.broadcast %25 : f32 to vector<8x128xf32>
    %109 = arith.mulf %108, %73 : vector<8x128xf32>
    %110 = vector.broadcast %1 : f32 to vector<8x128xf32>
    %111 = arith.mulf %110, %76 : vector<8x128xf32>
    %112 = arith.addf %109, %111 : vector<8x128xf32>
    %113 = arith.addf %97, %107 : vector<8x128xf32>
    %114 = arith.addf %102, %112 : vector<8x128xf32>
    %115 = vector.broadcast %2 : f32 to vector<8x128xf32>
    %116 = arith.mulf %115, %62 : vector<8x128xf32>
    %117 = vector.broadcast %26 : f32 to vector<8x128xf32>
    %118 = arith.mulf %117, %64 : vector<8x128xf32>
    %119 = arith.subf %116, %118 : vector<8x128xf32>
    %120 = vector.broadcast %26 : f32 to vector<8x128xf32>
    %121 = arith.mulf %120, %62 : vector<8x128xf32>
    %122 = vector.broadcast %2 : f32 to vector<8x128xf32>
    %123 = arith.mulf %122, %64 : vector<8x128xf32>
    %124 = arith.addf %121, %123 : vector<8x128xf32>
    %125 = arith.addf %113, %119 : vector<8x128xf32>
    %126 = arith.addf %114, %124 : vector<8x128xf32>
    %127 = vector.broadcast %3 : f32 to vector<8x128xf32>
    %128 = arith.mulf %127, %83 : vector<8x128xf32>
    %129 = vector.broadcast %27 : f32 to vector<8x128xf32>
    %130 = arith.mulf %129, %86 : vector<8x128xf32>
    %131 = arith.subf %128, %130 : vector<8x128xf32>
    %132 = vector.broadcast %27 : f32 to vector<8x128xf32>
    %133 = arith.mulf %132, %83 : vector<8x128xf32>
    %134 = vector.broadcast %3 : f32 to vector<8x128xf32>
    %135 = arith.mulf %134, %86 : vector<8x128xf32>
    %136 = arith.addf %133, %135 : vector<8x128xf32>
    %137 = arith.addf %125, %131 : vector<8x128xf32>
    %138 = arith.addf %126, %136 : vector<8x128xf32>
    %139 = vector.broadcast %4 : f32 to vector<8x128xf32>
    %140 = arith.mulf %139, %89 : vector<8x128xf32>
    %141 = vector.broadcast %28 : f32 to vector<8x128xf32>
    %142 = arith.mulf %141, %92 : vector<8x128xf32>
    %143 = arith.subf %140, %142 : vector<8x128xf32>
    %144 = vector.broadcast %28 : f32 to vector<8x128xf32>
    %145 = arith.mulf %144, %89 : vector<8x128xf32>
    %146 = vector.broadcast %4 : f32 to vector<8x128xf32>
    %147 = arith.mulf %146, %92 : vector<8x128xf32>
    %148 = arith.addf %145, %147 : vector<8x128xf32>
    %149 = arith.addf %137, %143 : vector<8x128xf32>
    %150 = arith.addf %138, %148 : vector<8x128xf32>
    %151 = vector.broadcast %5 : f32 to vector<8x128xf32>
    %152 = arith.mulf %151, %78 : vector<8x128xf32>
    %153 = vector.broadcast %29 : f32 to vector<8x128xf32>
    %154 = arith.mulf %153, %80 : vector<8x128xf32>
    %155 = arith.subf %152, %154 : vector<8x128xf32>
    %156 = vector.broadcast %29 : f32 to vector<8x128xf32>
    %157 = arith.mulf %156, %78 : vector<8x128xf32>
    %158 = vector.broadcast %5 : f32 to vector<8x128xf32>
    %159 = arith.mulf %158, %80 : vector<8x128xf32>
    %160 = arith.addf %157, %159 : vector<8x128xf32>
    %161 = arith.addf %149, %155 : vector<8x128xf32>
    %162 = arith.addf %150, %160 : vector<8x128xf32>
    %163 = vector.broadcast %48 : f32 to vector<8x128xf32>
    %164 = arith.addf %161, %163 : vector<8x128xf32>
    %165 = vector.broadcast %52 : f32 to vector<8x128xf32>
    %166 = arith.addf %162, %165 : vector<8x128xf32>
    %167 = arith.mulf %164, %164 : vector<8x128xf32>
    %168 = arith.mulf %166, %166 : vector<8x128xf32>
    %169 = arith.addf %167, %168 : vector<8x128xf32>
    %cst_63 = arith.constant 9.99999993E-9 : f32
    %170 = vector.broadcast %cst_63 : f32 to vector<8x128xf32>
    %171 = arith.addf %169, %170 : vector<8x128xf32>
    %172 = math.sqrt %171 : vector<8x128xf32>
    %173 = math.sqrt %172 : vector<8x128xf32>
    %c0_64 = arith.constant 0 : index
    %c0_65 = arith.constant 0 : index
    %c0_66 = arith.constant 0 : index
    %c0_67 = arith.constant 0 : index
    %174 = vector.load %arg8[%c0_64, %c0_65, %c0_66, %c0_67] : memref<1x4x8x128xf32, #tpu.memory_space<vmem>>, vector<1x1x8x128xf32>
    %175 = vector.shape_cast %174 : vector<1x1x8x128xf32> to vector<8x128xf32>
    %176 = vector.shape_cast %173 : vector<8x128xf32> to vector<1x1x8x128xf32>
    tpu.vector_store %arg8[%c0_64, %c0_65, %c0_66, %c0_67], %176 {strides = array<i32>} : memref<1x4x8x128xf32, #tpu.memory_space<vmem>>, vector<1x1x8x128xf32>,
    %177 = vector.broadcast %6 : f32 to vector<8x128xf32>
    %178 = arith.mulf %177, %67 : vector<8x128xf32>
    %179 = vector.broadcast %30 : f32 to vector<8x128xf32>
    %180 = arith.mulf %179, %70 : vector<8x128xf32>
    %181 = arith.subf %178, %180 : vector<8x128xf32>
    %182 = vector.broadcast %30 : f32 to vector<8x128xf32>
    %183 = arith.mulf %182, %67 : vector<8x128xf32>
    %184 = vector.broadcast %6 : f32 to vector<8x128xf32>
    %185 = arith.mulf %184, %70 : vector<8x128xf32>
    %186 = arith.addf %183, %185 : vector<8x128xf32>
    %187 = vector.broadcast %7 : f32 to vector<8x128xf32>
    %188 = arith.mulf %187, %73 : vector<8x128xf32>
    %189 = vector.broadcast %31 : f32 to vector<8x128xf32>
    %190 = arith.mulf %189, %76 : vector<8x128xf32>
    %191 = arith.subf %188, %190 : vector<8x128xf32>
    %192 = vector.broadcast %31 : f32 to vector<8x128xf32>
    %193 = arith.mulf %192, %73 : vector<8x128xf32>
    %194 = vector.broadcast %7 : f32 to vector<8x128xf32>
    %195 = arith.mulf %194, %76 : vector<8x128xf32>
    %196 = arith.addf %193, %195 : vector<8x128xf32>
    %197 = arith.addf %181, %191 : vector<8x128xf32>
    %198 = arith.addf %186, %196 : vector<8x128xf32>
    %199 = vector.broadcast %8 : f32 to vector<8x128xf32>
    %200 = arith.mulf %199, %62 : vector<8x128xf32>
    %201 = vector.broadcast %32 : f32 to vector<8x128xf32>
    %202 = arith.mulf %201, %64 : vector<8x128xf32>
    %203 = arith.subf %200, %202 : vector<8x128xf32>
    %204 = vector.broadcast %32 : f32 to vector<8x128xf32>
    %205 = arith.mulf %204, %62 : vector<8x128xf32>
    %206 = vector.broadcast %8 : f32 to vector<8x128xf32>
    %207 = arith.mulf %206, %64 : vector<8x128xf32>
    %208 = arith.addf %205, %207 : vector<8x128xf32>
    %209 = arith.addf %197, %203 : vector<8x128xf32>
    %210 = arith.addf %198, %208 : vector<8x128xf32>
    %211 = vector.broadcast %9 : f32 to vector<8x128xf32>
    %212 = arith.mulf %211, %83 : vector<8x128xf32>
    %213 = vector.broadcast %33 : f32 to vector<8x128xf32>
    %214 = arith.mulf %213, %86 : vector<8x128xf32>
    %215 = arith.subf %212, %214 : vector<8x128xf32>
    %216 = vector.broadcast %33 : f32 to vector<8x128xf32>
    %217 = arith.mulf %216, %83 : vector<8x128xf32>
    %218 = vector.broadcast %9 : f32 to vector<8x128xf32>
    %219 = arith.mulf %218, %86 : vector<8x128xf32>
    %220 = arith.addf %217, %219 : vector<8x128xf32>
    %221 = arith.addf %209, %215 : vector<8x128xf32>
    %222 = arith.addf %210, %220 : vector<8x128xf32>
    %223 = vector.broadcast %10 : f32 to vector<8x128xf32>
    %224 = arith.mulf %223, %89 : vector<8x128xf32>
    %225 = vector.broadcast %34 : f32 to vector<8x128xf32>
    %226 = arith.mulf %225, %92 : vector<8x128xf32>
    %227 = arith.subf %224, %226 : vector<8x128xf32>
    %228 = vector.broadcast %34 : f32 to vector<8x128xf32>
    %229 = arith.mulf %228, %89 : vector<8x128xf32>
    %230 = vector.broadcast %10 : f32 to vector<8x128xf32>
    %231 = arith.mulf %230, %92 : vector<8x128xf32>
    %232 = arith.addf %229, %231 : vector<8x128xf32>
    %233 = arith.addf %221, %227 : vector<8x128xf32>
    %234 = arith.addf %222, %232 : vector<8x128xf32>
    %235 = vector.broadcast %11 : f32 to vector<8x128xf32>
    %236 = arith.mulf %235, %78 : vector<8x128xf32>
    %237 = vector.broadcast %35 : f32 to vector<8x128xf32>
    %238 = arith.mulf %237, %80 : vector<8x128xf32>
    %239 = arith.subf %236, %238 : vector<8x128xf32>
    %240 = vector.broadcast %35 : f32 to vector<8x128xf32>
    %241 = arith.mulf %240, %78 : vector<8x128xf32>
    %242 = vector.broadcast %11 : f32 to vector<8x128xf32>
    %243 = arith.mulf %242, %80 : vector<8x128xf32>
    %244 = arith.addf %241, %243 : vector<8x128xf32>
    %245 = arith.addf %233, %239 : vector<8x128xf32>
    %246 = arith.addf %234, %244 : vector<8x128xf32>
    %247 = vector.broadcast %49 : f32 to vector<8x128xf32>
    %248 = arith.addf %245, %247 : vector<8x128xf32>
    %249 = vector.broadcast %53 : f32 to vector<8x128xf32>
    %250 = arith.addf %246, %249 : vector<8x128xf32>
    %251 = arith.mulf %248, %248 : vector<8x128xf32>
    %252 = arith.mulf %250, %250 : vector<8x128xf32>
    %253 = arith.addf %251, %252 : vector<8x128xf32>
    %cst_68 = arith.constant 9.99999993E-9 : f32
    %254 = vector.broadcast %cst_68 : f32 to vector<8x128xf32>
    %255 = arith.addf %253, %254 : vector<8x128xf32>
    %256 = math.sqrt %255 : vector<8x128xf32>
    %257 = math.sqrt %256 : vector<8x128xf32>
    %c0_69 = arith.constant 0 : index
    %c1_70 = arith.constant 1 : index
    %c0_71 = arith.constant 0 : index
    %c0_72 = arith.constant 0 : index
    %258 = vector.load %arg8[%c0_69, %c1_70, %c0_71, %c0_72] : memref<1x4x8x128xf32, #tpu.memory_space<vmem>>, vector<1x1x8x128xf32>
    %259 = vector.shape_cast %258 : vector<1x1x8x128xf32> to vector<8x128xf32>
    %260 = vector.shape_cast %257 : vector<8x128xf32> to vector<1x1x8x128xf32>
    tpu.vector_store %arg8[%c0_69, %c1_70, %c0_71, %c0_72], %260 {strides = array<i32>} : memref<1x4x8x128xf32, #tpu.memory_space<vmem>>, vector<1x1x8x128xf32>,
    %261 = vector.broadcast %12 : f32 to vector<8x128xf32>
    %262 = arith.mulf %261, %67 : vector<8x128xf32>
    %263 = vector.broadcast %36 : f32 to vector<8x128xf32>
    %264 = arith.mulf %263, %70 : vector<8x128xf32>
    %265 = arith.subf %262, %264 : vector<8x128xf32>
    %266 = vector.broadcast %36 : f32 to vector<8x128xf32>
    %267 = arith.mulf %266, %67 : vector<8x128xf32>
    %268 = vector.broadcast %12 : f32 to vector<8x128xf32>
    %269 = arith.mulf %268, %70 : vector<8x128xf32>
    %270 = arith.addf %267, %269 : vector<8x128xf32>
    %271 = vector.broadcast %13 : f32 to vector<8x128xf32>
    %272 = arith.mulf %271, %73 : vector<8x128xf32>
    %273 = vector.broadcast %37 : f32 to vector<8x128xf32>
    %274 = arith.mulf %273, %76 : vector<8x128xf32>
    %275 = arith.subf %272, %274 : vector<8x128xf32>
    %276 = vector.broadcast %37 : f32 to vector<8x128xf32>
    %277 = arith.mulf %276, %73 : vector<8x128xf32>
    %278 = vector.broadcast %13 : f32 to vector<8x128xf32>
    %279 = arith.mulf %278, %76 : vector<8x128xf32>
    %280 = arith.addf %277, %279 : vector<8x128xf32>
    %281 = arith.addf %265, %275 : vector<8x128xf32>
    %282 = arith.addf %270, %280 : vector<8x128xf32>
    %283 = vector.broadcast %14 : f32 to vector<8x128xf32>
    %284 = arith.mulf %283, %62 : vector<8x128xf32>
    %285 = vector.broadcast %38 : f32 to vector<8x128xf32>
    %286 = arith.mulf %285, %64 : vector<8x128xf32>
    %287 = arith.subf %284, %286 : vector<8x128xf32>
    %288 = vector.broadcast %38 : f32 to vector<8x128xf32>
    %289 = arith.mulf %288, %62 : vector<8x128xf32>
    %290 = vector.broadcast %14 : f32 to vector<8x128xf32>
    %291 = arith.mulf %290, %64 : vector<8x128xf32>
    %292 = arith.addf %289, %291 : vector<8x128xf32>
    %293 = arith.addf %281, %287 : vector<8x128xf32>
    %294 = arith.addf %282, %292 : vector<8x128xf32>
    %295 = vector.broadcast %15 : f32 to vector<8x128xf32>
    %296 = arith.mulf %295, %83 : vector<8x128xf32>
    %297 = vector.broadcast %39 : f32 to vector<8x128xf32>
    %298 = arith.mulf %297, %86 : vector<8x128xf32>
    %299 = arith.subf %296, %298 : vector<8x128xf32>
    %300 = vector.broadcast %39 : f32 to vector<8x128xf32>
    %301 = arith.mulf %300, %83 : vector<8x128xf32>
    %302 = vector.broadcast %15 : f32 to vector<8x128xf32>
    %303 = arith.mulf %302, %86 : vector<8x128xf32>
    %304 = arith.addf %301, %303 : vector<8x128xf32>
    %305 = arith.addf %293, %299 : vector<8x128xf32>
    %306 = arith.addf %294, %304 : vector<8x128xf32>
    %307 = vector.broadcast %16 : f32 to vector<8x128xf32>
    %308 = arith.mulf %307, %89 : vector<8x128xf32>
    %309 = vector.broadcast %40 : f32 to vector<8x128xf32>
    %310 = arith.mulf %309, %92 : vector<8x128xf32>
    %311 = arith.subf %308, %310 : vector<8x128xf32>
    %312 = vector.broadcast %40 : f32 to vector<8x128xf32>
    %313 = arith.mulf %312, %89 : vector<8x128xf32>
    %314 = vector.broadcast %16 : f32 to vector<8x128xf32>
    %315 = arith.mulf %314, %92 : vector<8x128xf32>
    %316 = arith.addf %313, %315 : vector<8x128xf32>
    %317 = arith.addf %305, %311 : vector<8x128xf32>
    %318 = arith.addf %306, %316 : vector<8x128xf32>
    %319 = vector.broadcast %17 : f32 to vector<8x128xf32>
    %320 = arith.mulf %319, %78 : vector<8x128xf32>
    %321 = vector.broadcast %41 : f32 to vector<8x128xf32>
    %322 = arith.mulf %321, %80 : vector<8x128xf32>
    %323 = arith.subf %320, %322 : vector<8x128xf32>
    %324 = vector.broadcast %41 : f32 to vector<8x128xf32>
    %325 = arith.mulf %324, %78 : vector<8x128xf32>
    %326 = vector.broadcast %17 : f32 to vector<8x128xf32>
    %327 = arith.mulf %326, %80 : vector<8x128xf32>
    %328 = arith.addf %325, %327 : vector<8x128xf32>
    %329 = arith.addf %317, %323 : vector<8x128xf32>
    %330 = arith.addf %318, %328 : vector<8x128xf32>
    %331 = vector.broadcast %50 : f32 to vector<8x128xf32>
    %332 = arith.addf %329, %331 : vector<8x128xf32>
    %333 = vector.broadcast %54 : f32 to vector<8x128xf32>
    %334 = arith.addf %330, %333 : vector<8x128xf32>
    %335 = arith.mulf %332, %332 : vector<8x128xf32>
    %336 = arith.mulf %334, %334 : vector<8x128xf32>
    %337 = arith.addf %335, %336 : vector<8x128xf32>
    %cst_73 = arith.constant 9.99999993E-9 : f32
    %338 = vector.broadcast %cst_73 : f32 to vector<8x128xf32>
    %339 = arith.addf %337, %338 : vector<8x128xf32>
    %340 = math.sqrt %339 : vector<8x128xf32>
    %341 = math.sqrt %340 : vector<8x128xf32>
    %c0_74 = arith.constant 0 : index
    %c2_75 = arith.constant 2 : index
    %c0_76 = arith.constant 0 : index
    %c0_77 = arith.constant 0 : index
    %342 = vector.load %arg8[%c0_74, %c2_75, %c0_76, %c0_77] : memref<1x4x8x128xf32, #tpu.memory_space<vmem>>, vector<1x1x8x128xf32>
    %343 = vector.shape_cast %342 : vector<1x1x8x128xf32> to vector<8x128xf32>
    %344 = vector.shape_cast %341 : vector<8x128xf32> to vector<1x1x8x128xf32>
    tpu.vector_store %arg8[%c0_74, %c2_75, %c0_76, %c0_77], %344 {strides = array<i32>} : memref<1x4x8x128xf32, #tpu.memory_space<vmem>>, vector<1x1x8x128xf32>,
    %345 = vector.broadcast %18 : f32 to vector<8x128xf32>
    %346 = arith.mulf %345, %67 : vector<8x128xf32>
    %347 = vector.broadcast %42 : f32 to vector<8x128xf32>
    %348 = arith.mulf %347, %70 : vector<8x128xf32>
    %349 = arith.subf %346, %348 : vector<8x128xf32>
    %350 = vector.broadcast %42 : f32 to vector<8x128xf32>
    %351 = arith.mulf %350, %67 : vector<8x128xf32>
    %352 = vector.broadcast %18 : f32 to vector<8x128xf32>
    %353 = arith.mulf %352, %70 : vector<8x128xf32>
    %354 = arith.addf %351, %353 : vector<8x128xf32>
    %355 = vector.broadcast %19 : f32 to vector<8x128xf32>
    %356 = arith.mulf %355, %73 : vector<8x128xf32>
    %357 = vector.broadcast %43 : f32 to vector<8x128xf32>
    %358 = arith.mulf %357, %76 : vector<8x128xf32>
    %359 = arith.subf %356, %358 : vector<8x128xf32>
    %360 = vector.broadcast %43 : f32 to vector<8x128xf32>
    %361 = arith.mulf %360, %73 : vector<8x128xf32>
    %362 = vector.broadcast %19 : f32 to vector<8x128xf32>
    %363 = arith.mulf %362, %76 : vector<8x128xf32>
    %364 = arith.addf %361, %363 : vector<8x128xf32>
    %365 = arith.addf %349, %359 : vector<8x128xf32>
    %366 = arith.addf %354, %364 : vector<8x128xf32>
    %367 = vector.broadcast %20 : f32 to vector<8x128xf32>
    %368 = arith.mulf %367, %62 : vector<8x128xf32>
    %369 = vector.broadcast %44 : f32 to vector<8x128xf32>
    %370 = arith.mulf %369, %64 : vector<8x128xf32>
    %371 = arith.subf %368, %370 : vector<8x128xf32>
    %372 = vector.broadcast %44 : f32 to vector<8x128xf32>
    %373 = arith.mulf %372, %62 : vector<8x128xf32>
    %374 = vector.broadcast %20 : f32 to vector<8x128xf32>
    %375 = arith.mulf %374, %64 : vector<8x128xf32>
    %376 = arith.addf %373, %375 : vector<8x128xf32>
    %377 = arith.addf %365, %371 : vector<8x128xf32>
    %378 = arith.addf %366, %376 : vector<8x128xf32>
    %379 = vector.broadcast %21 : f32 to vector<8x128xf32>
    %380 = arith.mulf %379, %83 : vector<8x128xf32>
    %381 = vector.broadcast %45 : f32 to vector<8x128xf32>
    %382 = arith.mulf %381, %86 : vector<8x128xf32>
    %383 = arith.subf %380, %382 : vector<8x128xf32>
    %384 = vector.broadcast %45 : f32 to vector<8x128xf32>
    %385 = arith.mulf %384, %83 : vector<8x128xf32>
    %386 = vector.broadcast %21 : f32 to vector<8x128xf32>
    %387 = arith.mulf %386, %86 : vector<8x128xf32>
    %388 = arith.addf %385, %387 : vector<8x128xf32>
    %389 = arith.addf %377, %383 : vector<8x128xf32>
    %390 = arith.addf %378, %388 : vector<8x128xf32>
    %391 = vector.broadcast %22 : f32 to vector<8x128xf32>
    %392 = arith.mulf %391, %89 : vector<8x128xf32>
    %393 = vector.broadcast %46 : f32 to vector<8x128xf32>
    %394 = arith.mulf %393, %92 : vector<8x128xf32>
    %395 = arith.subf %392, %394 : vector<8x128xf32>
    %396 = vector.broadcast %46 : f32 to vector<8x128xf32>
    %397 = arith.mulf %396, %89 : vector<8x128xf32>
    %398 = vector.broadcast %22 : f32 to vector<8x128xf32>
    %399 = arith.mulf %398, %92 : vector<8x128xf32>
    %400 = arith.addf %397, %399 : vector<8x128xf32>
    %401 = arith.addf %389, %395 : vector<8x128xf32>
    %402 = arith.addf %390, %400 : vector<8x128xf32>
    %403 = vector.broadcast %23 : f32 to vector<8x128xf32>
    %404 = arith.mulf %403, %78 : vector<8x128xf32>
    %405 = vector.broadcast %47 : f32 to vector<8x128xf32>
    %406 = arith.mulf %405, %80 : vector<8x128xf32>
    %407 = arith.subf %404, %406 : vector<8x128xf32>
    %408 = vector.broadcast %47 : f32 to vector<8x128xf32>
    %409 = arith.mulf %408, %78 : vector<8x128xf32>
    %410 = vector.broadcast %23 : f32 to vector<8x128xf32>
    %411 = arith.mulf %410, %80 : vector<8x128xf32>
    %412 = arith.addf %409, %411 : vector<8x128xf32>
    %413 = arith.addf %401, %407 : vector<8x128xf32>
    %414 = arith.addf %402, %412 : vector<8x128xf32>
    %415 = vector.broadcast %51 : f32 to vector<8x128xf32>
    %416 = arith.addf %413, %415 : vector<8x128xf32>
    %417 = vector.broadcast %55 : f32 to vector<8x128xf32>
    %418 = arith.addf %414, %417 : vector<8x128xf32>
    %419 = arith.mulf %416, %416 : vector<8x128xf32>
    %420 = arith.mulf %418, %418 : vector<8x128xf32>
    %421 = arith.addf %419, %420 : vector<8x128xf32>
    %cst_78 = arith.constant 9.99999993E-9 : f32
    %422 = vector.broadcast %cst_78 : f32 to vector<8x128xf32>
    %423 = arith.addf %421, %422 : vector<8x128xf32>
    %424 = math.sqrt %423 : vector<8x128xf32>
    %425 = math.sqrt %424 : vector<8x128xf32>
    %c0_79 = arith.constant 0 : index
    %c3_80 = arith.constant 3 : index
    %c0_81 = arith.constant 0 : index
    %c0_82 = arith.constant 0 : index
    %426 = vector.load %arg8[%c0_79, %c3_80, %c0_81, %c0_82] : memref<1x4x8x128xf32, #tpu.memory_space<vmem>>, vector<1x1x8x128xf32>
    %427 = vector.shape_cast %426 : vector<1x1x8x128xf32> to vector<8x128xf32>
    %428 = vector.shape_cast %425 : vector<8x128xf32> to vector<1x1x8x128xf32>
    tpu.vector_store %arg8[%c0_79, %c3_80, %c0_81, %c0_82], %428 {strides = array<i32>} : memref<1x4x8x128xf32, #tpu.memory_space<vmem>>, vector<1x1x8x128xf32>,
    return
  }
  func.func @transform_0(%arg0: i32, %arg1: i32) -> (i32, i32, i32, i32) {
    %c0_i32 = arith.constant 0 : i32
    %c0_i32_0 = arith.constant 0 : i32
    %c0_i32_1 = arith.constant 0 : i32
    return %arg0, %c0_i32, %arg1, %c0_i32_0 : i32, i32, i32, i32
  }
  func.func @transform_1(%arg0: i32, %arg1: i32) -> (i32, i32, i32, i32) {
    %c0_i32 = arith.constant 0 : i32
    %c0_i32_0 = arith.constant 0 : i32
    %c0_i32_1 = arith.constant 0 : i32
    return %arg0, %c0_i32, %arg1, %c0_i32_0 : i32, i32, i32, i32
  }
  func.func @transform_2(%arg0: i32, %arg1: i32) -> i32 {
    %c0_i32 = arith.constant 0 : i32
    %c0_i32_0 = arith.constant 0 : i32
    return %c0_i32 : i32
  }
  func.func @transform_3(%arg0: i32, %arg1: i32) -> i32 {
    %c0_i32 = arith.constant 0 : i32
    %c0_i32_0 = arith.constant 0 : i32
    return %c0_i32 : i32
  }
  func.func @transform_4(%arg0: i32, %arg1: i32) -> i32 {
    %c0_i32 = arith.constant 0 : i32
    %c0_i32_0 = arith.constant 0 : i32
    return %c0_i32 : i32
  }
  func.func @transform_5(%arg0: i32, %arg1: i32) -> i32 {
    %c0_i32 = arith.constant 0 : i32
    %c0_i32_0 = arith.constant 0 : i32
    return %c0_i32 : i32
  }
  func.func @transform_6(%arg0: i32, %arg1: i32) -> (i32, i32, i32, i32) {
    %c0_i32 = arith.constant 0 : i32
    %c0_i32_0 = arith.constant 0 : i32
    %c0_i32_1 = arith.constant 0 : i32
    return %arg0, %c0_i32, %arg1, %c0_i32_0 : i32, i32, i32, i32
  }
}

</mosaic_0001>

<llo_original>
// kernel: mul.21
$region0: #{mul.21}
  %s0 = inlined_call_operand.vmem [shape: f32[2,2], index: 0, kind: input, shape index: {}]
  %s1 = inlined_call_operand.vmem [shape: f32[4], index: 1, kind: output, shape index: {}]
  $region1: #{mul.21} parent=0
    #allocation0 [shape = 'u8[4096]{0}', space=vmem, size = 0x1000, scoped, tag = 'scoped mem for output reshape']
    #allocation1 [shape = 'u8[4096]{0}', space=vmem, size = 0x1000, scoped, tag = 'scoped mem for input reshape']
    %s3 = sshll.u32 1, 2
    %s4 = ssub.s32 %s3, 1
    %v5 = vld [vmem:[%s0] sm:%s4]
    %6 = vst [vmem:[#allocation1] sm:%s4] %v5
    %v7 = vld [vmem:[#allocation1] sm:$0x1]
    %vm8 = vcmask 15360
    %9 = vst.msk [vmem:[#allocation0] sm:$0x1] %vm8, %v7
    %s10 = scalar_lea.vmem [#allocation1], 1
    %v11 = vld [vmem:[%s10] sm:$0x1]
    %12 = vrot.lane.b32.xlu0 %v11, 2
    %v13 = vpop.permute.xlu0 %12
    %vm14 = vcmask 31760
    %15 = vst.msk [vmem:[#allocation0] sm:$0x1] %vm14, %v13
    %s17 = sshll.u32 1, 1
    %s18 = ssub.s32 %s17, 1
    %v20 = vld [vmem:[#allocation0] sm:%s18]
    %s21 = sshll.u32 1, 1
    %s22 = ssub.s32 %s21, 1
    %23 = vst [vmem:[%s1] sm:%s22] %v20

// kernel: phase_encoder_forward.1
$region0: #{phase_encoder_forward.1}
  #allocation0 [shape = 'u32[]', space=smem, size = 0x4, offset = 0x4, fixed_abs, tag = 'smem constant byte address 0x4 - core index']
  #allocation1 [shape = 'u32[144,128]{1,0:T(1,128)}', space=vmem, size = 0x12000, scoped, tag = 'internal scratch']
  %s0 = inlined_call_operand.vmem [shape: f32[2,2,16,128], index: 0, kind: input, shape index: {}]
  %s1 = inlined_call_operand.vmem [shape: f32[2,2,16,128], index: 1, kind: input, shape index: {}]
  %s2 = inlined_call_operand.vmem [shape: f32[24], index: 2, kind: input, shape index: {}]
  %s3 = inlined_call_operand.vmem [shape: f32[24], index: 3, kind: input, shape index: {}]
  %s4 = inlined_call_operand.vmem [shape: f32[4], index: 4, kind: input, shape index: {}]
  %s5 = inlined_call_operand.vmem [shape: f32[4], index: 5, kind: input, shape index: {}]
  %s6 = inlined_call_operand.hbm [shape: f32[2,4,16,128], index: 6, kind: output, shape index: {}]
  %s7 = sld [smem:[#allocation0]]
  $region149: #{phase_encoder_forward.1} parent=0
    _
  %s9 = ssub.s32 1, %s7
  %s10 = scalar_select 0, %s9, %s7
  $region1: #{phase_encoder_forward.1} parent=0
    #allocation2 [shape = 'u8[16384]{0}', space=vmem, size = 0x4000, scoped, tag = 'input window, operand 0']
    #allocation3 [shape = 'u8[16384]{0}', space=vmem, size = 0x4000, scoped, tag = 'input window, operand 1']
    #allocation4 [shape = 'u8[512]{0}', space=smem, size = 0x200, scoped, tag = 'input window, operand 2, single buffered']
    #allocation5 [shape = 's32[2]{0}', space=sflag, size = 0x8, scoped, tag = 'scoped memory for phase_encoder_forward.1']
    #allocation6 [shape = 's32[2]{0}', space=sflag, size = 0x8, scoped, tag = 'scoped memory for phase_encoder_forward.1']
    #allocation7 [shape = 'u8[512]{0}', space=smem, size = 0x200, scoped, tag = 'input window, operand 3, single buffered']
    #allocation8 [shape = 's32[1]{0}', space=sflag, size = 0x4, scoped, tag = 'scoped memory for phase_encoder_forward.1']
    #allocation9 [shape = 'u8[512]{0}', space=smem, size = 0x200, scoped, tag = 'input window, operand 4, single buffered']
    #allocation10 [shape = 'u8[512]{0}', space=smem, size = 0x200, scoped, tag = 'input window, operand 5, single buffered']
    #allocation11 [shape = 's32[1]{0}', space=sflag, size = 0x4, scoped, tag = 'scoped memory for phase_encoder_forward.1']
    #allocation12 [shape = 'u8[32768]{0}', space=vmem, size = 0x8000, scoped, tag = 'output window, operand 0']
    %11 = vsyncpa [#allocation6], 0
    %12 = vsyncpa [#allocation8], 0
    %13 = vsyncpa [#allocation11], 0
    %14 = vsyncpa [#allocation5], 0
    %s15 = scalar_lea.sflag [#allocation5], 1
    %16 = vsyncpa %s15, 0
    loop: start=0, step=1, limit=6
    $region2: #{phase_encoder_forward.1} parent=1 // loop_pre_header
      _
    $region3: #{phase_encoder_forward.1} parent=1 // loop_header
      %s18 = sphi 0, %s22
      %p19 = scmp.ge.s32.totalorder %s18, 6
      %s25 = sphi 0, %s37
      %s26 = sphi 0, %s33
      %s27 = sphi 0, %s25
      %s28 = sphi 0, %s26
      %s29 = sphi 0, %s27
      %s30 = sphi 0, %s28
      %s42 = sphi 0, %s44
      %s45 = sphi 0, %s42
      %s46 = sphi 0, %s45
      %s62 = sphi 0, %s46
      %s70 = sphi 0, %s72
      %s73 = sphi 0, %s70
      %s74 = sphi 0, %s73
      %s90 = sphi 0, %s74
      %s94 = sphi 0, %s94
      %s96 = sphi 0, %s94
      %s97 = sphi 0, %s96
      %s111 = sphi 0, %s97
      %s115 = sphi 0, %s115
      %s117 = sphi 0, %s115
      %s118 = sphi 0, %s117
      %s132 = sphi 0, %s118
      %s136 = sphi 0, %s136
      %s138 = sphi 0, %s136
      %s139 = sphi 0, %s138
      %s153 = sphi 0, %s139
      %s157 = sphi 0, %s157
      %s159 = sphi 0, %s157
      %s160 = sphi 0, %s159
      %s174 = sphi 0, %s160
      %s182 = sphi 0, %s184
      %s185 = sphi 0, %s182
      %s186 = sphi 0, %s185
      %s202 = sphi 0, %s186
    $region4: #{phase_encoder_forward.1} parent=1 // loop_header_branch
      %21 = sbr.rel (%p19) target = $region8
    $region5: #{phase_encoder_forward.1} parent=1 // loop_body
      %s23 = ssub.s32 %s18, 1
      %s24 = ssub.s32 %s18, 2
      %s31 = sadd.s32 1, %s26
      %p32 = scmp.ge.s32.totalorder %s31, 2
      %s33 = scalar_select %p32, 0, %s31
      %s34 = sadd.s32 1, %s25
      %s35 = scalar_select %p32, %s34, %s25
      %p36 = scmp.ge.s32.totalorder %s35, 2
      %s37 = scalar_select %p36, 0, %s35
      %s38 = ssub.s32 %s25, %s37
      %s39 = ssub.s32 %s26, %s33
      %s40 = sor.u32 %s38, %s39
      %p41 = scmp.eq.s32.totalorder %s40, 0
      %s43 = sadd.s32 %s42, 1
      %s44 = scalar_select %p41, %s42, %s43
      %p47 = pneg %p41
      %p48 = scmp.eq.s32.totalorder %s18, 3
      %p49 = por %p47, %p48
      %p50 = scmp.ne.s32.totalorder %s42, %s45
      %p51 = scmp.eq.s32.totalorder %s18, 0
      %p52 = por %p50, %p51
      %p53 = scmp.ne.s32.totalorder %s42, %s45
      %p54 = scmp.eq.s32.totalorder %s23, 3
      %p55 = por %p53, %p54
      %p56 = scmp.ne.s32.totalorder %s45, %s46
      %p57 = scmp.eq.s32.totalorder %s23, 0
      %p58 = por %p56, %p57
      %p59 = scmp.ne.s32.totalorder %s45, %s46
      %p60 = scmp.eq.s32.totalorder %s24, 3
      %p61 = por %p59, %p60
      %p63 = scmp.ne.s32.totalorder %s46, %s62
      %p64 = scmp.eq.s32.totalorder %s24, 0
      %p65 = por %p63, %p64
      %s66 = ssub.s32 %s25, %s37
      %s67 = ssub.s32 %s26, %s33
      %s68 = sor.u32 %s66, %s67
      %p69 = scmp.eq.s32.totalorder %s68, 0
      %s71 = sadd.s32 %s70, 1
      %s72 = scalar_select %p69, %s70, %s71
      %p75 = pneg %p69
      %p76 = scmp.eq.s32.totalorder %s18, 3
      %p77 = por %p75, %p76
      %p78 = scmp.ne.s32.totalorder %s70, %s73
      %p79 = scmp.eq.s32.totalorder %s18, 0
      %p80 = por %p78, %p79
      %p81 = scmp.ne.s32.totalorder %s70, %s73
      %p82 = scmp.eq.s32.totalorder %s23, 3
      %p83 = por %p81, %p82
      %p84 = scmp.ne.s32.totalorder %s73, %s74
      %p85 = scmp.eq.s32.totalorder %s23, 0
      %p86 = por %p84, %p85
      %p87 = scmp.ne.s32.totalorder %s73, %s74
      %p88 = scmp.eq.s32.totalorder %s24, 3
      %p89 = por %p87, %p88
      %p91 = scmp.ne.s32.totalorder %s74, %s90
      %p92 = scmp.eq.s32.totalorder %s24, 0
      %p93 = por %p91, %p92
      %s95 = sadd.s32 %s94, 1
      %p98 = scmp.eq.s32.totalorder %s18, 3
      %p99 = scmp.ne.s32.totalorder %s94, %s96
      %p100 = scmp.eq.s32.totalorder %s18, 0
      %p101 = por %p99, %p100
      %p102 = scmp.ne.s32.totalorder %s94, %s96
      %p103 = scmp.eq.s32.totalorder %s23, 3
      %p104 = por %p102, %p103
      %p105 = scmp.ne.s32.totalorder %s96, %s97
      %p106 = scmp.eq.s32.totalorder %s23, 0
      %p107 = por %p105, %p106
      %p108 = scmp.ne.s32.totalorder %s96, %s97
      %p109 = scmp.eq.s32.totalorder %s24, 3
      %p110 = por %p108, %p109
      %p112 = scmp.ne.s32.totalorder %s97, %s111
      %p113 = scmp.eq.s32.totalorder %s24, 0
      %p114 = por %p112, %p113
      %s116 = sadd.s32 %s115, 1
      %p119 = scmp.eq.s32.totalorder %s18, 3
      %p120 = scmp.ne.s32.totalorder %s115, %s117
      %p121 = scmp.eq.s32.totalorder %s18, 0
      %p122 = por %p120, %p121
      %p123 = scmp.ne.s32.totalorder %s115, %s117
      %p124 = scmp.eq.s32.totalorder %s23, 3
      %p125 = por %p123, %p124
      %p126 = scmp.ne.s32.totalorder %s117, %s118
      %p127 = scmp.eq.s32.totalorder %s23, 0
      %p128 = por %p126, %p127
      %p129 = scmp.ne.s32.totalorder %s117, %s118
      %p130 = scmp.eq.s32.totalorder %s24, 3
      %p131 = por %p129, %p130
      %p133 = scmp.ne.s32.totalorder %s118, %s132
      %p134 = scmp.eq.s32.totalorder %s24, 0
      %p135 = por %p133, %p134
      %s137 = sadd.s32 %s136, 1
      %p140 = scmp.eq.s32.totalorder %s18, 3
      %p141 = scmp.ne.s32.totalorder %s136, %s138
      %p142 = scmp.eq.s32.totalorder %s18, 0
      %p143 = por %p141, %p142
      %p144 = scmp.ne.s32.totalorder %s136, %s138
      %p145 = scmp.eq.s32.totalorder %s23, 3
      %p146 = por %p144, %p145
      %p147 = scmp.ne.s32.totalorder %s138, %s139
      %p148 = scmp.eq.s32.totalorder %s23, 0
      %p149 = por %p147, %p148
      %p150 = scmp.ne.s32.totalorder %s138, %s139
      %p151 = scmp.eq.s32.totalorder %s24, 3
      %p152 = por %p150, %p151
      %p154 = scmp.ne.s32.totalorder %s139, %s153
      %p155 = scmp.eq.s32.totalorder %s24, 0
      %p156 = por %p154, %p155
      %s158 = sadd.s32 %s157, 1
      %p161 = scmp.eq.s32.totalorder %s18, 3
      %p162 = scmp.ne.s32.totalorder %s157, %s159
      %p163 = scmp.eq.s32.totalorder %s18, 0
      %p164 = por %p162, %p163
      %p165 = scmp.ne.s32.totalorder %s157, %s159
      %p166 = scmp.eq.s32.totalorder %s23, 3
      %p167 = por %p165, %p166
      %p168 = scmp.ne.s32.totalorder %s159, %s160
      %p169 = scmp.eq.s32.totalorder %s23, 0
      %p170 = por %p168, %p169
      %p171 = scmp.ne.s32.totalorder %s159, %s160
      %p172 = scmp.eq.s32.totalorder %s24, 3
      %p173 = por %p171, %p172
      %p175 = scmp.ne.s32.totalorder %s160, %s174
      %p176 = scmp.eq.s32.totalorder %s24, 0
      %p177 = por %p175, %p176
      %s178 = ssub.s32 %s25, %s37
      %s179 = ssub.s32 %s26, %s33
      %s180 = sor.u32 %s178, %s179
      %p181 = scmp.eq.s32.totalorder %s180, 0
      %s183 = sadd.s32 %s182, 1
      %s184 = scalar_select %p181, %s182, %s183
      %p187 = pneg %p181
      %p188 = scmp.eq.s32.totalorder %s18, 3
      %p189 = por %p187, %p188
      %p190 = scmp.ne.s32.totalorder %s182, %s185
      %p191 = scmp.eq.s32.totalorder %s18, 0
      %p192 = por %p190, %p191
      %p193 = scmp.ne.s32.totalorder %s182, %s185
      %p194 = scmp.eq.s32.totalorder %s23, 3
      %p195 = por %p193, %p194
      %p196 = scmp.ne.s32.totalorder %s185, %s186
      %p197 = scmp.eq.s32.totalorder %s23, 0
      %p198 = por %p196, %p197
      %p199 = scmp.ne.s32.totalorder %s185, %s186
      %p200 = scmp.eq.s32.totalorder %s24, 3
      %p201 = por %p199, %p200
      %p203 = scmp.ne.s32.totalorder %s186, %s202
      %p204 = scmp.eq.s32.totalorder %s24, 0
      %p205 = por %p203, %p204
      %p206 = scmp.le.s32.totalorder 1, %s18
      %p207 = scmp.lt.s32.totalorder %s18, 5
      %p208 = pnand %p206, %p207
      %p209 = pneg %p208
      // Predicated region
      $region9: #{phase_encoder_forward.1} parent=5 // pred_check
        _
      $region10: #{phase_encoder_forward.1} parent=5 // pred_check_branch
        %211 = sbr.rel (%p208) target = $region12
      $region11: #{phase_encoder_forward.1} parent=5 // pred_region
        %s212 = ssub.s32 %s18, 1
        // Predicated region
        $region13: #{phase_encoder_forward.1} parent=11 // pred_check
          %p213 = pneg %p107
        $region14: #{phase_encoder_forward.1} parent=11 // pred_check_branch
          %215 = sbr.rel (%p213) target = $region16
        $region15: #{phase_encoder_forward.1} parent=11 // pred_region
          %s217 = ssub.s32 16, 16
          %218 = vsyncadd [#allocation6], %s217
          %s220 = sshll.u32 %s2, 4
          %s221 = int_to_ptr.vmem [resolvable:$true] %s220
          %223 = dma.vmem_to_smem %s221, 16, [#allocation4], [#allocation6]
        $region16: #{phase_encoder_forward.1} parent=11 // pred_fallthru
          _
        // Predicated region
        $region17: #{phase_encoder_forward.1} parent=11 // pred_check
          %p224 = pneg %p128
        $region18: #{phase_encoder_forward.1} parent=11 // pred_check_branch
          %226 = sbr.rel (%p224) target = $region20
        $region19: #{phase_encoder_forward.1} parent=11 // pred_region
          %s228 = ssub.s32 16, 16
          %229 = vsyncadd [#allocation8], %s228
          %s231 = sshll.u32 %s3, 4
          %s232 = int_to_ptr.vmem [resolvable:$true] %s231
          %234 = dma.vmem_to_smem %s232, 16, [#allocation7], [#allocation8]
        $region20: #{phase_encoder_forward.1} parent=11 // pred_fallthru
          _
        // Predicated region
        $region21: #{phase_encoder_forward.1} parent=11 // pred_check
          %p235 = pneg %p149
        $region22: #{phase_encoder_forward.1} parent=11 // pred_check_branch
          %237 = sbr.rel (%p235) target = $region24
        $region23: #{phase_encoder_forward.1} parent=11 // pred_region
          %s239 = ssub.s32 16, 16
          %240 = vsyncadd [#allocation8], %s239
          %s242 = sshll.u32 %s4, 4
          %s243 = int_to_ptr.vmem [resolvable:$true] %s242
          %245 = dma.vmem_to_smem %s243, 16, [#allocation9], [#allocation8]
        $region24: #{phase_encoder_forward.1} parent=11 // pred_fallthru
          _
        // Predicated region
        $region25: #{phase_encoder_forward.1} parent=11 // pred_check
          %p246 = pneg %p170
        $region26: #{phase_encoder_forward.1} parent=11 // pred_check_branch
          %248 = sbr.rel (%p246) target = $region28
        $region27: #{phase_encoder_forward.1} parent=11 // pred_region
          %s250 = ssub.s32 16, 16
          %251 = vsyncadd [#allocation11], %s250
          %s253 = sshll.u32 %s5, 4
          %s254 = int_to_ptr.vmem [resolvable:$true] %s253
          %256 = dma.vmem_to_smem %s254, 16, [#allocation10], [#allocation11]
        $region28: #{phase_encoder_forward.1} parent=11 // pred_fallthru
          _
      $region12: #{phase_encoder_forward.1} parent=5 // pred_fallthru
        _
      %p257 = scmp.lt.s32.totalorder %s18, 4
      // Predicated region
      $region29: #{phase_encoder_forward.1} parent=5 // pred_check
        %p258 = pneg %p257
      $region30: #{phase_encoder_forward.1} parent=5 // pred_check_branch
        %260 = sbr.rel (%p258) target = $region32
      $region31: #{phase_encoder_forward.1} parent=5 // pred_region
        // Predicated region
        $region33: #{phase_encoder_forward.1} parent=31 // pred_check
          %p261 = pneg %p52
        $region34: #{phase_encoder_forward.1} parent=31 // pred_check_branch
          %263 = sbr.rel (%p261) target = $region36
        $region35: #{phase_encoder_forward.1} parent=31 // pred_region
          %s264 = sand.u32 %s42, 1
          %s265 = sand.u32 %s42, 1
          %s266 = smul.addr %s265, 16
          %s267 = scalar_lea.vmem [#allocation2], %s266
          %s268 = smul.addr %s25, 4
          %s269 = sadd.s32 %s26, %s268
          %s270 = smul.addr %s269, 8
          %s271 = scalar_lea.vmem %s0, %s270
          // Predicated region
          $region37: #{phase_encoder_forward.1} parent=35 // pred_check
            _
          $region38: #{phase_encoder_forward.1} parent=35 // pred_check_branch
            %273 = sbr.rel (0) target = $region40
          $region39: #{phase_encoder_forward.1} parent=35 // pred_region
            // Predicated region
            $region41: #{phase_encoder_forward.1} parent=39 // pred_check
              _
            $region42: #{phase_encoder_forward.1} parent=39 // pred_check_branch
              %275 = sbr.rel (0) target = $region44
            $region43: #{phase_encoder_forward.1} parent=39 // pred_region
              // Predicated region
              $region56: #{phase_encoder_forward.1} parent=43 // pred_check
                _
              $region57: #{phase_encoder_forward.1} parent=43 // pred_check_branch
                %293 = sbr.rel (0) target = $region59
              $region58: #{phase_encoder_forward.1} parent=43 // pred_region
                loop: start=0, step=1, limit=1
                $region60: #{phase_encoder_forward.1} parent=58 // loop_pre_header
                  _
                $region61: #{phase_encoder_forward.1} parent=58 // loop_header
                  %s295 = sphi 0, %s299
                  %p296 = scmp.ge.s32.totalorder %s295, 1
                  %s300 = sphi %s271, %s271
                  %s301 = sphi %s267, %s267
                $region62: #{phase_encoder_forward.1} parent=58 // loop_header_branch
                  %298 = sbr.rel (%p296) target = $region66
                $region63: #{phase_encoder_forward.1} parent=58 // loop_body
                  %v302 = vld [vmem:[%s300] sm:$0xff]
                  %303 = vst [vmem:[%s301] sm:$0xff] %v302
                  %v304 = vld [vmem:[%s300 + $0x10] sm:$0xff]
                  %305 = vst [vmem:[%s301 + $0x8] sm:$0xff] %v304
                $region64: #{phase_encoder_forward.1} parent=58 // loop_footer
                  %s299 = sadd.s32 1, %s295
                $region65: #{phase_encoder_forward.1} parent=58 // loop_footer_branch
                  %294 = sbr.rel target = $region61
                $region66: #{phase_encoder_forward.1} parent=58 // loop_exit
                  _
              $region59: #{phase_encoder_forward.1} parent=43 // pred_fallthru
                _
              // Predicated region
              $region67: #{phase_encoder_forward.1} parent=43 // pred_check
                _
              $region68: #{phase_encoder_forward.1} parent=43 // pred_check_branch
                %307 = sbr.rel target = $region70
              $region69: #{phase_encoder_forward.1} parent=43 // pred_region
                _
              $region70: #{phase_encoder_forward.1} parent=43 // pred_fallthru
                _
            $region44: #{phase_encoder_forward.1} parent=39 // pred_fallthru
              _
            // Predicated region
            $region45: #{phase_encoder_forward.1} parent=39 // pred_check
              _
            $region46: #{phase_encoder_forward.1} parent=39 // pred_check_branch
              %277 = sbr.rel target = $region48
            $region47: #{phase_encoder_forward.1} parent=39 // pred_region
              %s279 = ssub.s32 256, 1
              loop: start=0, step=1, limit=1
              $region49: #{phase_encoder_forward.1} parent=47 // loop_pre_header
                _
              $region50: #{phase_encoder_forward.1} parent=47 // loop_header
                %s281 = sphi 0, %s285
                %p282 = scmp.ge.s32.totalorder %s281, 1
                %s286 = sphi %s271, %s271
                %s287 = sphi %s267, %s267
              $region51: #{phase_encoder_forward.1} parent=47 // loop_header_branch
                %284 = sbr.rel (%p282) target = $region55
              $region52: #{phase_encoder_forward.1} parent=47 // loop_body
                %v288 = vld [vmem:[%s286] sm:%s279]
                %289 = vst [vmem:[%s287] sm:%s279] %v288
                %v290 = vld [vmem:[%s286 + $0x10] sm:%s279]
                %291 = vst [vmem:[%s287 + $0x8] sm:%s279] %v290
              $region53: #{phase_encoder_forward.1} parent=47 // loop_footer
                %s285 = sadd.s32 1, %s281
              $region54: #{phase_encoder_forward.1} parent=47 // loop_footer_branch
                %280 = sbr.rel target = $region50
              $region55: #{phase_encoder_forward.1} parent=47 // loop_exit
                _
            $region48: #{phase_encoder_forward.1} parent=39 // pred_fallthru
              _
          $region40: #{phase_encoder_forward.1} parent=35 // pred_fallthru
            _
          %308 = vnop
        $region36: #{phase_encoder_forward.1} parent=31 // pred_fallthru
          _
        // Predicated region
        $region71: #{phase_encoder_forward.1} parent=31 // pred_check
          %p309 = pneg %p80
        $region72: #{phase_encoder_forward.1} parent=31 // pred_check_branch
          %311 = sbr.rel (%p309) target = $region74
        $region73: #{phase_encoder_forward.1} parent=31 // pred_region
          %s312 = sand.u32 %s70, 1
          %s313 = sand.u32 %s70, 1
          %s314 = smul.addr %s313, 16
          %s315 = scalar_lea.vmem [#allocation3], %s314
          %s316 = smul.addr %s25, 4
          %s317 = sadd.s32 %s26, %s316
          %s318 = smul.addr %s317, 8
          %s319 = scalar_lea.vmem %s1, %s318
          // Predicated region
          $region75: #{phase_encoder_forward.1} parent=73 // pred_check
            _
          $region76: #{phase_encoder_forward.1} parent=73 // pred_check_branch
            %321 = sbr.rel (0) target = $region78
          $region77: #{phase_encoder_forward.1} parent=73 // pred_region
            // Predicated region
            $region79: #{phase_encoder_forward.1} parent=77 // pred_check
              _
            $region80: #{phase_encoder_forward.1} parent=77 // pred_check_branch
              %323 = sbr.rel (0) target = $region82
            $region81: #{phase_encoder_forward.1} parent=77 // pred_region
              // Predicated region
              $region94: #{phase_encoder_forward.1} parent=81 // pred_check
                _
              $region95: #{phase_encoder_forward.1} parent=81 // pred_check_branch
                %341 = sbr.rel (0) target = $region97
              $region96: #{phase_encoder_forward.1} parent=81 // pred_region
                loop: start=0, step=1, limit=1
                $region98: #{phase_encoder_forward.1} parent=96 // loop_pre_header
                  _
                $region99: #{phase_encoder_forward.1} parent=96 // loop_header
                  %s343 = sphi 0, %s347
                  %p344 = scmp.ge.s32.totalorder %s343, 1
                  %s348 = sphi %s319, %s319
                  %s349 = sphi %s315, %s315
                $region100: #{phase_encoder_forward.1} parent=96 // loop_header_branch
                  %346 = sbr.rel (%p344) target = $region104
                $region101: #{phase_encoder_forward.1} parent=96 // loop_body
                  %v350 = vld [vmem:[%s348] sm:$0xff]
                  %351 = vst [vmem:[%s349] sm:$0xff] %v350
                  %v352 = vld [vmem:[%s348 + $0x10] sm:$0xff]
                  %353 = vst [vmem:[%s349 + $0x8] sm:$0xff] %v352
                $region102: #{phase_encoder_forward.1} parent=96 // loop_footer
                  %s347 = sadd.s32 1, %s343
                $region103: #{phase_encoder_forward.1} parent=96 // loop_footer_branch
                  %342 = sbr.rel target = $region99
                $region104: #{phase_encoder_forward.1} parent=96 // loop_exit
                  _
              $region97: #{phase_encoder_forward.1} parent=81 // pred_fallthru
                _
              // Predicated region
              $region105: #{phase_encoder_forward.1} parent=81 // pred_check
                _
              $region106: #{phase_encoder_forward.1} parent=81 // pred_check_branch
                %355 = sbr.rel target = $region108
              $region107: #{phase_encoder_forward.1} parent=81 // pred_region
                _
              $region108: #{phase_encoder_forward.1} parent=81 // pred_fallthru
                _
            $region82: #{phase_encoder_forward.1} parent=77 // pred_fallthru
              _
            // Predicated region
            $region83: #{phase_encoder_forward.1} parent=77 // pred_check
              _
            $region84: #{phase_encoder_forward.1} parent=77 // pred_check_branch
              %325 = sbr.rel target = $region86
            $region85: #{phase_encoder_forward.1} parent=77 // pred_region
              %s327 = ssub.s32 256, 1
              loop: start=0, step=1, limit=1
              $region87: #{phase_encoder_forward.1} parent=85 // loop_pre_header
                _
              $region88: #{phase_encoder_forward.1} parent=85 // loop_header
                %s329 = sphi 0, %s333
                %p330 = scmp.ge.s32.totalorder %s329, 1
                %s334 = sphi %s319, %s319
                %s335 = sphi %s315, %s315
              $region89: #{phase_encoder_forward.1} parent=85 // loop_header_branch
                %332 = sbr.rel (%p330) target = $region93
              $region90: #{phase_encoder_forward.1} parent=85 // loop_body
                %v336 = vld [vmem:[%s334] sm:%s327]
                %337 = vst [vmem:[%s335] sm:%s327] %v336
                %v338 = vld [vmem:[%s334 + $0x10] sm:%s327]
                %339 = vst [vmem:[%s335 + $0x8] sm:%s327] %v338
              $region91: #{phase_encoder_forward.1} parent=85 // loop_footer
                %s333 = sadd.s32 1, %s329
              $region92: #{phase_encoder_forward.1} parent=85 // loop_footer_branch
                %328 = sbr.rel target = $region88
              $region93: #{phase_encoder_forward.1} parent=85 // loop_exit
                _
            $region86: #{phase_encoder_forward.1} parent=77 // pred_fallthru
              _
          $region78: #{phase_encoder_forward.1} parent=73 // pred_fallthru
            _
          %356 = vnop
        $region74: #{phase_encoder_forward.1} parent=31 // pred_fallthru
          _
      $region32: #{phase_encoder_forward.1} parent=5 // pred_fallthru
        _
      %p357 = scmp.le.s32.totalorder 1, %s18
      %p358 = scmp.lt.s32.totalorder %s18, 5
      %p359 = pnand %p357, %p358
      %p360 = pneg %p359
      // Predicated region
      $region109: #{phase_encoder_forward.1} parent=5 // pred_check
        _
      $region110: #{phase_encoder_forward.1} parent=5 // pred_check_branch
        %362 = sbr.rel (%p359) target = $region112
      $region111: #{phase_encoder_forward.1} parent=5 // pred_region
        %s363 = ssub.s32 %s18, 1
        %s364 = sand.u32 %s45, 1
        %s365 = sand.u32 %s45, 1
        %s366 = smul.addr %s365, 16
        %s367 = scalar_lea.vmem [#allocation2], %s366
        // Predicated region
        $region113: #{phase_encoder_forward.1} parent=111 // pred_check
          %p368 = pneg %p58
        $region114: #{phase_encoder_forward.1} parent=111 // pred_check_branch
          %370 = sbr.rel (%p368) target = $region116
        $region115: #{phase_encoder_forward.1} parent=111 // pred_region
          _
        $region116: #{phase_encoder_forward.1} parent=111 // pred_fallthru
          _
        %s371 = sand.u32 %s73, 1
        %s372 = sand.u32 %s73, 1
        %s373 = smul.addr %s372, 16
        %s374 = scalar_lea.vmem [#allocation3], %s373
        // Predicated region
        $region117: #{phase_encoder_forward.1} parent=111 // pred_check
          %p375 = pneg %p86
        $region118: #{phase_encoder_forward.1} parent=111 // pred_check_branch
          %377 = sbr.rel (%p375) target = $region120
        $region119: #{phase_encoder_forward.1} parent=111 // pred_region
          _
        $region120: #{phase_encoder_forward.1} parent=111 // pred_fallthru
          _
        // Predicated region
        $region121: #{phase_encoder_forward.1} parent=111 // pred_check
          %p378 = pneg %p107
        $region122: #{phase_encoder_forward.1} parent=111 // pred_check_branch
          %380 = sbr.rel (%p378) target = $region124
        $region123: #{phase_encoder_forward.1} parent=111 // pred_region
          %381 = dma.done [#allocation6], 16
        $region124: #{phase_encoder_forward.1} parent=111 // pred_fallthru
          _
        // Predicated region
        $region125: #{phase_encoder_forward.1} parent=111 // pred_check
          %p382 = pneg %p128
        $region126: #{phase_encoder_forward.1} parent=111 // pred_check_branch
          %384 = sbr.rel (%p382) target = $region128
        $region127: #{phase_encoder_forward.1} parent=111 // pred_region
          %385 = dma.done [#allocation8], 16
        $region128: #{phase_encoder_forward.1} parent=111 // pred_fallthru
          _
        // Predicated region
        $region129: #{phase_encoder_forward.1} parent=111 // pred_check
          %p386 = pneg %p149
        $region130: #{phase_encoder_forward.1} parent=111 // pred_check_branch
          %388 = sbr.rel (%p386) target = $region132
        $region131: #{phase_encoder_forward.1} parent=111 // pred_region
          %389 = dma.done [#allocation8], 16
        $region132: #{phase_encoder_forward.1} parent=111 // pred_fallthru
          _
        // Predicated region
        $region133: #{phase_encoder_forward.1} parent=111 // pred_check
          %p390 = pneg %p170
        $region134: #{phase_encoder_forward.1} parent=111 // pred_check_branch
          %392 = sbr.rel (%p390) target = $region136
        $region135: #{phase_encoder_forward.1} parent=111 // pred_region
          %393 = dma.done [#allocation11], 16
        $region136: #{phase_encoder_forward.1} parent=111 // pred_fallthru
          _
        %394 = sfence
        %s395 = sand.u32 %s45, 1
        %s396 = sand.u32 %s45, 1
        %s397 = smul.addr %s396, 16
        %s398 = scalar_lea.vmem [#allocation2], %s397
        %p399 = pneg %p58
        %p400 = pneg %p55
        %s401 = sand.u32 %s73, 1
        %s402 = sand.u32 %s73, 1
        %s403 = smul.addr %s402, 16
        %s404 = scalar_lea.vmem [#allocation3], %s403
        %p405 = pneg %p86
        %p406 = pneg %p83
        %p407 = pneg %p107
        %p408 = pneg %p104
        %p409 = pneg %p128
        %p410 = pneg %p125
        %p411 = pneg %p149
        %p412 = pneg %p146
        %p413 = pneg %p170
        %p414 = pneg %p167
        %p415 = pneg %p198
        %p416 = pneg %p195
        %s417 = sand.u32 %s185, 1
        %s418 = scalar_lea.sflag [#allocation5], %s417
        %s419 = sand.u32 %s185, 1
        %s420 = smul.addr %s419, 32
        %s421 = scalar_lea.vmem [#allocation12], %s420
        %s422 = sld [smem:[#allocation4]]
        %s423 = sld [smem:[#allocation4 + $0x1]]
        %s424 = sld [smem:[#allocation4 + $0x2]]
        %s425 = sld [smem:[#allocation4 + $0x3]]
        %s426 = sld [smem:[#allocation4 + $0x4]]
        %s427 = sld [smem:[#allocation4 + $0x5]]
        %s428 = sld [smem:[#allocation4 + $0x6]]
        %s429 = sld [smem:[#allocation4 + $0x7]]
        %s430 = sld [smem:[#allocation4 + $0x8]]
        %s431 = sld [smem:[#allocation4 + $0x9]]
        %s432 = sld [smem:[#allocation4 + $0xa]]
        %s433 = sld [smem:[#allocation4 + $0xb]]
        %s434 = sld [smem:[#allocation4 + $0xc]]
        %s435 = sld [smem:[#allocation4 + $0xd]]
        %s436 = sld [smem:[#allocation4 + $0xe]]
        %s437 = sld [smem:[#allocation4 + $0xf]]
        %s438 = sld [smem:[#allocation4 + $0x10]]
        %s439 = sld [smem:[#allocation4 + $0x11]]
        %s440 = sld [smem:[#allocation4 + $0x12]]
        %s441 = sld [smem:[#allocation4 + $0x13]]
        %s442 = sld [smem:[#allocation4 + $0x14]]
        %s443 = sld [smem:[#allocation4 + $0x15]]
        %s444 = sld [smem:[#allocation4 + $0x16]]
        %s445 = sld [smem:[#allocation4 + $0x17]]
        %s446 = sld [smem:[#allocation7]]
        %s447 = sld [smem:[#allocation7 + $0x1]]
        %s448 = sld [smem:[#allocation7 + $0x2]]
        %s449 = sld [smem:[#allocation7 + $0x3]]
        %s450 = sld [smem:[#allocation7 + $0x4]]
        %s451 = sld [smem:[#allocation7 + $0x5]]
        %s452 = sld [smem:[#allocation7 + $0x6]]
        %s453 = sld [smem:[#allocation7 + $0x7]]
        %s454 = sld [smem:[#allocation7 + $0x8]]
        %s455 = sld [smem:[#allocation7 + $0x9]]
        %s456 = sld [smem:[#allocation7 + $0xa]]
        %s457 = sld [smem:[#allocation7 + $0xb]]
        %s458 = sld [smem:[#allocation7 + $0xc]]
        %s459 = sld [smem:[#allocation7 + $0xd]]
        %s460 = sld [smem:[#allocation7 + $0xe]]
        %s461 = sld [smem:[#allocation7 + $0xf]]
        %s462 = sld [smem:[#allocation7 + $0x10]]
        %s463 = sld [smem:[#allocation7 + $0x11]]
        %s464 = sld [smem:[#allocation7 + $0x12]]
        %s465 = sld [smem:[#allocation7 + $0x13]]
        %s466 = sld [smem:[#allocation7 + $0x14]]
        %s467 = sld [smem:[#allocation7 + $0x15]]
        %s468 = sld [smem:[#allocation7 + $0x16]]
        %s469 = sld [smem:[#allocation7 + $0x17]]
        %s470 = sld [smem:[#allocation9]]
        %s471 = sld [smem:[#allocation9 + $0x1]]
        %s472 = sld [smem:[#allocation9 + $0x2]]
        %s473 = sld [smem:[#allocation9 + $0x3]]
        %s474 = sld [smem:[#allocation10]]
        %s475 = sld [smem:[#allocation10 + $0x1]]
        %s476 = sld [smem:[#allocation10 + $0x2]]
        %s477 = sld [smem:[#allocation10 + $0x3]]
        %v478 = vlaneseq
        %v479 = vand.u32 %v478, 127
        %vm480 = vcmp.ge.s32.totalorder %v479, 1
        %vm481 = vcmp.ge.s32.totalorder %v479, 2
        %v482 = vld [vmem:[%s367] sm:$0xff]
        %s483 = scalar_lea.vmem %s367, 8 [#allocation2]
        %v484 = vld [vmem:[%s483] sm:$0xff]
        %485 = vrot.lane.b32.xlu0 %v482, 2
        %v486 = vpop.permute.xlu0 %485
        %v487 = vsel %vm481, %v486, 0.0
        %488 = vrot.lane.b32.xlu0 %v484, 2
        %v489 = vpop.permute.xlu0 %488
        %v490 = vsel %vm481, %v489, 0.0
        %491 = vrot.lane.b32.xlu0 %v482, 1
        %v492 = vpop.permute.xlu0 %491
        %v493 = vsel %vm480, %v492, 0.0
        %494 = vrot.lane.b32.xlu0 %v484, 1
        %v495 = vpop.permute.xlu0 %494
        %v496 = vsel %vm480, %v495, 0.0
        %v497 = vld [vmem:[%s374] sm:$0xff]
        %s498 = scalar_lea.vmem %s374, 8 [#allocation3]
        %v499 = vld [vmem:[%s498] sm:$0xff]
        %500 = vrot.lane.b32.xlu0 %v497, 2
        %v501 = vpop.permute.xlu0 %500
        %v502 = vsel %vm481, %v501, 0.0
        %503 = vrot.lane.b32.xlu0 %v499, 2
        %v504 = vpop.permute.xlu0 %503
        %v505 = vsel %vm481, %v504, 0.0
        %506 = vrot.lane.b32.xlu0 %v497, 1
        %v507 = vpop.permute.xlu0 %506
        %v508 = vsel %vm480, %v507, 0.0
        %509 = vrot.lane.b32.xlu0 %v499, 1
        %v510 = vpop.permute.xlu0 %509
        %v511 = vsel %vm480, %v510, 0.0
        %v512 = vstv %s422
        %v513 = vmul.f32 %v512, %v487
        %v514 = vstv %s446
        %v515 = vmul.f32 %v514, %v490
        %v516 = vsub.f32 %v513, %v515
        %v517 = vmul.f32 %v514, %v487
        %v518 = vmul.f32 %v512, %v490
        %v519 = vadd.f32 %v517, %v518
        %v520 = vstv %s423
        %v521 = vmul.f32 %v520, %v493
        %v522 = vstv %s447
        %v523 = vmul.f32 %v522, %v496
        %v524 = vsub.f32 %v521, %v523
        %v525 = vmul.f32 %v522, %v493
        %v526 = vmul.f32 %v520, %v496
        %v527 = vadd.f32 %v525, %v526
        %v528 = vadd.f32 %v516, %v524
        %v529 = vadd.f32 %v519, %v527
        %v530 = vstv %s424
        %v531 = vmul.f32 %v530, %v482
        %v532 = vstv %s448
        %v533 = vmul.f32 %v532, %v484
        %v534 = vsub.f32 %v531, %v533
        %v535 = vmul.f32 %v532, %v482
        %v536 = vmul.f32 %v530, %v484
        %v537 = vadd.f32 %v535, %v536
        %v538 = vadd.f32 %v528, %v534
        %v539 = vadd.f32 %v529, %v537
        %v540 = vstv %s425
        %v541 = vmul.f32 %v540, %v502
        %v542 = vstv %s449
        %v543 = vmul.f32 %v542, %v505
        %v544 = vsub.f32 %v541, %v543
        %v545 = vmul.f32 %v542, %v502
        %v546 = vmul.f32 %v540, %v505
        %v547 = vadd.f32 %v545, %v546
        %v548 = vadd.f32 %v538, %v544
        %v549 = vadd.f32 %v539, %v547
        %v550 = vstv %s426
        %v551 = vmul.f32 %v550, %v508
        %v552 = vstv %s450
        %v553 = vmul.f32 %v552, %v511
        %v554 = vsub.f32 %v551, %v553
        %v555 = vmul.f32 %v552, %v508
        %v556 = vmul.f32 %v550, %v511
        %v557 = vadd.f32 %v555, %v556
        %v558 = vadd.f32 %v548, %v554
        %v559 = vadd.f32 %v549, %v557
        %v560 = vstv %s427
        %v561 = vmul.f32 %v560, %v497
        %v562 = vstv %s451
        %v563 = vmul.f32 %v562, %v499
        %v564 = vsub.f32 %v561, %v563
        %v565 = vmul.f32 %v562, %v497
        %v566 = vmul.f32 %v560, %v499
        %v567 = vadd.f32 %v565, %v566
        %v568 = vadd.f32 %v558, %v564
        %v569 = vadd.f32 %v559, %v567
        %v570 = vstv %s470
        %v571 = vadd.f32 %v568, %v570
        %v572 = vstv %s474
        %v573 = vadd.f32 %v569, %v572
        %v574 = vmul.f32 %v571, %v571
        %v575 = vmul.f32 %v573, %v573
        %v576 = vadd.f32 %v574, %v575
        %v577 = vadd.f32 %v576, 1e-08
        %v578 = vrsqrt.pop %v577
        %v579 = vmul.f32 %v577, %v578
        %vm580 = vcmp.eq.f32.partialorder %v577, inf
        %v581 = vsel %vm580, %v577, %v579
        %vm582 = vcmp.eq.f32.partialorder %v577, 0.0
        %v583 = vand.u32 %v577, 2147483648
        %v584 = vsel %vm582, %v583, %v581
        %v585 = vrsqrt.pop %v584
        %v586 = vmul.f32 %v584, %v585
        %vm587 = vcmp.eq.f32.partialorder %v584, inf
        %v588 = vsel %vm587, %v584, %v586
        %vm589 = vcmp.eq.f32.partialorder %v584, 0.0
        %v590 = vand.u32 %v584, 2147483648
        %v591 = vsel %vm589, %v590, %v588
        %592 = vst [vmem:[%s421] sm:$0xff] %v591
        %v593 = vstv %s428
        %v594 = vmul.f32 %v593, %v487
        %v595 = vstv %s452
        %v596 = vmul.f32 %v595, %v490
        %v597 = vsub.f32 %v594, %v596
        %v598 = vmul.f32 %v595, %v487
        %v599 = vmul.f32 %v593, %v490
        %v600 = vadd.f32 %v598, %v599
        %v601 = vstv %s429
        %v602 = vmul.f32 %v601, %v493
        %v603 = vstv %s453
        %v604 = vmul.f32 %v603, %v496
        %v605 = vsub.f32 %v602, %v604
        %v606 = vmul.f32 %v603, %v493
        %v607 = vmul.f32 %v601, %v496
        %v608 = vadd.f32 %v606, %v607
        %v609 = vadd.f32 %v597, %v605
        %v610 = vadd.f32 %v600, %v608
        %v611 = vstv %s430
        %v612 = vmul.f32 %v611, %v482
        %v613 = vstv %s454
        %v614 = vmul.f32 %v613, %v484
        %v615 = vsub.f32 %v612, %v614
        %v616 = vmul.f32 %v613, %v482
        %v617 = vmul.f32 %v611, %v484
        %v618 = vadd.f32 %v616, %v617
        %v619 = vadd.f32 %v609, %v615
        %v620 = vadd.f32 %v610, %v618
        %v621 = vstv %s431
        %v622 = vmul.f32 %v621, %v502
        %v623 = vstv %s455
        %v624 = vmul.f32 %v623, %v505
        %v625 = vsub.f32 %v622, %v624
        %v626 = vmul.f32 %v623, %v502
        %v627 = vmul.f32 %v621, %v505
        %v628 = vadd.f32 %v626, %v627
        %v629 = vadd.f32 %v619, %v625
        %v630 = vadd.f32 %v620, %v628
        %v631 = vstv %s432
        %v632 = vmul.f32 %v631, %v508
        %v633 = vstv %s456
        %v634 = vmul.f32 %v633, %v511
        %v635 = vsub.f32 %v632, %v634
        %v636 = vmul.f32 %v633, %v508
        %v637 = vmul.f32 %v631, %v511
        %v638 = vadd.f32 %v636, %v637
        %v639 = vadd.f32 %v629, %v635
        %v640 = vadd.f32 %v630, %v638
        %v641 = vstv %s433
        %v642 = vmul.f32 %v641, %v497
        %v643 = vstv %s457
        %v644 = vmul.f32 %v643, %v499
        %v645 = vsub.f32 %v642, %v644
        %v646 = vmul.f32 %v643, %v497
        %v647 = vmul.f32 %v641, %v499
        %v648 = vadd.f32 %v646, %v647
        %v649 = vadd.f32 %v639, %v645
        %v650 = vadd.f32 %v640, %v648
        %v651 = vstv %s471
        %v652 = vadd.f32 %v649, %v651
        %v653 = vstv %s475
        %v654 = vadd.f32 %v650, %v653
        %v655 = vmul.f32 %v652, %v652
        %v656 = vmul.f32 %v654, %v654
        %v657 = vadd.f32 %v655, %v656
        %v658 = vadd.f32 %v657, 1e-08
        %v659 = vrsqrt.pop %v658
        %v660 = vmul.f32 %v658, %v659
        %vm661 = vcmp.eq.f32.partialorder %v658, inf
        %v662 = vsel %vm661, %v658, %v660
        %vm663 = vcmp.eq.f32.partialorder %v658, 0.0
        %v664 = vand.u32 %v658, 2147483648
        %v665 = vsel %vm663, %v664, %v662
        %v666 = vrsqrt.pop %v665
        %v667 = vmul.f32 %v665, %v666
        %vm668 = vcmp.eq.f32.partialorder %v665, inf
        %v669 = vsel %vm668, %v665, %v667
        %vm670 = vcmp.eq.f32.partialorder %v665, 0.0
        %v671 = vand.u32 %v665, 2147483648
        %v672 = vsel %vm670, %v671, %v669
        %s673 = scalar_lea.vmem %s421, 8 [#allocation12]
        %674 = vst [vmem:[%s673] sm:$0xff] %v672
        %v675 = vstv %s434
        %v676 = vmul.f32 %v675, %v487
        %v677 = vstv %s458
        %v678 = vmul.f32 %v677, %v490
        %v679 = vsub.f32 %v676, %v678
        %v680 = vmul.f32 %v677, %v487
        %v681 = vmul.f32 %v675, %v490
        %v682 = vadd.f32 %v680, %v681
        %v683 = vstv %s435
        %v684 = vmul.f32 %v683, %v493
        %v685 = vstv %s459
        %v686 = vmul.f32 %v685, %v496
        %v687 = vsub.f32 %v684, %v686
        %v688 = vmul.f32 %v685, %v493
        %v689 = vmul.f32 %v683, %v496
        %v690 = vadd.f32 %v688, %v689
        %v691 = vadd.f32 %v679, %v687
        %v692 = vadd.f32 %v682, %v690
        %v693 = vstv %s436
        %v694 = vmul.f32 %v693, %v482
        %v695 = vstv %s460
        %v696 = vmul.f32 %v695, %v484
        %v697 = vsub.f32 %v694, %v696
        %v698 = vmul.f32 %v695, %v482
        %v699 = vmul.f32 %v693, %v484
        %v700 = vadd.f32 %v698, %v699
        %v701 = vadd.f32 %v691, %v697
        %v702 = vadd.f32 %v692, %v700
        %v703 = vstv %s437
        %v704 = vmul.f32 %v703, %v502
        %v705 = vstv %s461
        %v706 = vmul.f32 %v705, %v505
        %v707 = vsub.f32 %v704, %v706
        %v708 = vmul.f32 %v705, %v502
        %v709 = vmul.f32 %v703, %v505
        %v710 = vadd.f32 %v708, %v709
        %v711 = vadd.f32 %v701, %v707
        %v712 = vadd.f32 %v702, %v710
        %v713 = vstv %s438
        %v714 = vmul.f32 %v713, %v508
        %v715 = vstv %s462
        %v716 = vmul.f32 %v715, %v511
        %v717 = vsub.f32 %v714, %v716
        %v718 = vmul.f32 %v715, %v508
        %v719 = vmul.f32 %v713, %v511
        %v720 = vadd.f32 %v718, %v719
        %v721 = vadd.f32 %v711, %v717
        %v722 = vadd.f32 %v712, %v720
        %v723 = vstv %s439
        %v724 = vmul.f32 %v723, %v497
        %v725 = vstv %s463
        %v726 = vmul.f32 %v725, %v499
        %v727 = vsub.f32 %v724, %v726
        %v728 = vmul.f32 %v725, %v497
        %v729 = vmul.f32 %v723, %v499
        %v730 = vadd.f32 %v728, %v729
        %v731 = vadd.f32 %v721, %v727
        %v732 = vadd.f32 %v722, %v730
        %v733 = vstv %s472
        %v734 = vadd.f32 %v731, %v733
        %v735 = vstv %s476
        %v736 = vadd.f32 %v732, %v735
        %v737 = vmul.f32 %v734, %v734
        %v738 = vmul.f32 %v736, %v736
        %v739 = vadd.f32 %v737, %v738
        %v740 = vadd.f32 %v739, 1e-08
        %v741 = vrsqrt.pop %v740
        %v742 = vmul.f32 %v740, %v741
        %vm743 = vcmp.eq.f32.partialorder %v740, inf
        %v744 = vsel %vm743, %v740, %v742
        %vm745 = vcmp.eq.f32.partialorder %v740, 0.0
        %v746 = vand.u32 %v740, 2147483648
        %v747 = vsel %vm745, %v746, %v744
        %v748 = vrsqrt.pop %v747
        %v749 = vmul.f32 %v747, %v748
        %vm750 = vcmp.eq.f32.partialorder %v747, inf
        %v751 = vsel %vm750, %v747, %v749
        %vm752 = vcmp.eq.f32.partialorder %v747, 0.0
        %v753 = vand.u32 %v747, 2147483648
        %v754 = vsel %vm752, %v753, %v751
        %s755 = scalar_lea.vmem %s421, 16 [#allocation12]
        %756 = vst [vmem:[%s755] sm:$0xff] %v754
        %v757 = vstv %s440
        %v758 = vmul.f32 %v757, %v487
        %v759 = vstv %s464
        %v760 = vmul.f32 %v759, %v490
        %v761 = vsub.f32 %v758, %v760
        %v762 = vmul.f32 %v759, %v487
        %v763 = vmul.f32 %v757, %v490
        %v764 = vadd.f32 %v762, %v763
        %v765 = vstv %s441
        %v766 = vmul.f32 %v765, %v493
        %v767 = vstv %s465
        %v768 = vmul.f32 %v767, %v496
        %v769 = vsub.f32 %v766, %v768
        %v770 = vmul.f32 %v767, %v493
        %v771 = vmul.f32 %v765, %v496
        %v772 = vadd.f32 %v770, %v771
        %v773 = vadd.f32 %v761, %v769
        %v774 = vadd.f32 %v764, %v772
        %v775 = vstv %s442
        %v776 = vmul.f32 %v775, %v482
        %v777 = vstv %s466
        %v778 = vmul.f32 %v777, %v484
        %v779 = vsub.f32 %v776, %v778
        %v780 = vmul.f32 %v777, %v482
        %v781 = vmul.f32 %v775, %v484
        %v782 = vadd.f32 %v780, %v781
        %v783 = vadd.f32 %v773, %v779
        %v784 = vadd.f32 %v774, %v782
        %v785 = vstv %s443
        %v786 = vmul.f32 %v785, %v502
        %v787 = vstv %s467
        %v788 = vmul.f32 %v787, %v505
        %v789 = vsub.f32 %v786, %v788
        %v790 = vmul.f32 %v787, %v502
        %v791 = vmul.f32 %v785, %v505
        %v792 = vadd.f32 %v790, %v791
        %v793 = vadd.f32 %v783, %v789
        %v794 = vadd.f32 %v784, %v792
        %v795 = vstv %s444
        %v796 = vmul.f32 %v795, %v508
        %v797 = vstv %s468
        %v798 = vmul.f32 %v797, %v511
        %v799 = vsub.f32 %v796, %v798
        %v800 = vmul.f32 %v797, %v508
        %v801 = vmul.f32 %v795, %v511
        %v802 = vadd.f32 %v800, %v801
        %v803 = vadd.f32 %v793, %v799
        %v804 = vadd.f32 %v794, %v802
        %v805 = vstv %s445
        %v806 = vmul.f32 %v805, %v497
        %v807 = vstv %s469
        %v808 = vmul.f32 %v807, %v499
        %v809 = vsub.f32 %v806, %v808
        %v810 = vmul.f32 %v807, %v497
        %v811 = vmul.f32 %v805, %v499
        %v812 = vadd.f32 %v810, %v811
        %v813 = vadd.f32 %v803, %v809
        %v814 = vadd.f32 %v804, %v812
        %v815 = vstv %s473
        %v816 = vadd.f32 %v813, %v815
        %v817 = vstv %s477
        %v818 = vadd.f32 %v814, %v817
        %v819 = vmul.f32 %v816, %v816
        %v820 = vmul.f32 %v818, %v818
        %v821 = vadd.f32 %v819, %v820
        %v822 = vadd.f32 %v821, 1e-08
        %v823 = vrsqrt.pop %v822
        %v824 = vmul.f32 %v822, %v823
        %vm825 = vcmp.eq.f32.partialorder %v822, inf
        %v826 = vsel %vm825, %v822, %v824
        %vm827 = vcmp.eq.f32.partialorder %v822, 0.0
        %v828 = vand.u32 %v822, 2147483648
        %v829 = vsel %vm827, %v828, %v826
        %v830 = vrsqrt.pop %v829
        %v831 = vmul.f32 %v829, %v830
        %vm832 = vcmp.eq.f32.partialorder %v829, inf
        %v833 = vsel %vm832, %v829, %v831
        %vm834 = vcmp.eq.f32.partialorder %v829, 0.0
        %v835 = vand.u32 %v829, 2147483648
        %v836 = vsel %vm834, %v835, %v833
        %s837 = scalar_lea.vmem %s421, 24 [#allocation12]
        %838 = vst [vmem:[%s837] sm:$0xff] %v836
        %s839 = sand.u32 %s185, 1
        %s840 = scalar_lea.sflag [#allocation5], %s839
        %s841 = sand.u32 %s185, 1
        %s842 = smul.addr %s841, 32
        %s843 = scalar_lea.vmem [#allocation12], %s842
        // Predicated region
        $region137: #{phase_encoder_forward.1} parent=111 // pred_check
          %p844 = pneg %p195
        $region138: #{phase_encoder_forward.1} parent=111 // pred_check_branch
          %846 = sbr.rel (%p844) target = $region140
        $region139: #{phase_encoder_forward.1} parent=111 // pred_region
          %s848 = ssub.s32 512, 512
          %849 = vsyncadd %s840, %s848
          %s850 = smul.addr %s27, 8
          %s851 = sadd.s32 %s28, %s850
          %s852 = smul.addr %s851, 128
          %s853 = scalar_lea.hbm %s6, %s852
          %s854 = sshll.u32 %s843, 4
          %s855 = int_to_ptr.vmem [resolvable:$true] %s854
          %860 = dma.vmem_to_hbm [thread:$0]  %s855, 512, %s853, %s840, 128, 256, 8
        $region140: #{phase_encoder_forward.1} parent=111 // pred_fallthru
          _
      $region112: #{phase_encoder_forward.1} parent=5 // pred_fallthru
        _
      %p861 = scmp.le.s32.totalorder 2, %s18
      // Predicated region
      $region141: #{phase_encoder_forward.1} parent=5 // pred_check
        %p862 = pneg %p861
      $region142: #{phase_encoder_forward.1} parent=5 // pred_check_branch
        %864 = sbr.rel (%p862) target = $region144
      $region143: #{phase_encoder_forward.1} parent=5 // pred_region
        %s865 = ssub.s32 %s18, 2
        // Predicated region
        $region145: #{phase_encoder_forward.1} parent=143 // pred_check
          %p866 = pneg %p201
        $region146: #{phase_encoder_forward.1} parent=143 // pred_check_branch
          %868 = sbr.rel (%p866) target = $region148
        $region147: #{phase_encoder_forward.1} parent=143 // pred_region
          %s869 = sand.u32 %s186, 1
          %s870 = scalar_lea.sflag [#allocation5], %s869
          %s871 = sand.u32 %s186, 1
          %s872 = smul.addr %s871, 32
          %s873 = scalar_lea.vmem [#allocation12], %s872
          %874 = dma.done %s870, 512
        $region148: #{phase_encoder_forward.1} parent=143 // pred_fallthru
          _
      $region144: #{phase_encoder_forward.1} parent=5 // pred_fallthru
        _
    $region6: #{phase_encoder_forward.1} parent=1 // loop_footer
      %s22 = sadd.s32 1, %s18
    $region7: #{phase_encoder_forward.1} parent=1 // loop_footer_branch
      %17 = sbr.rel target = $region3
    $region8: #{phase_encoder_forward.1} parent=1 // loop_exit
      _
    %875 = vsyncpa [#allocation5], 1
    %s876 = scalar_lea.sflag [#allocation5], 1
    %877 = vsyncpa %s876, 1
    %878 = vsyncpa [#allocation6], 1
    %s879 = scalar_lea.sflag [#allocation6], 1
    %880 = vsyncpa %s879, 1
    %881 = vsyncpa [#allocation8], 1
    %882 = vsyncpa [#allocation11], 1

</llo_original>
